<compile_context>
chip_gen: v5e
topology: v5e:2x2
jax: 0.10.0
libtpu: 0.0.40
codegen_flags: <defaults>
</compile_context>

<pallas_src>
import functools

import jax
import jax.numpy as jnp
from jax.experimental import pallas as pl
from jax.experimental.pallas import tpu as pltpu

_LANE = 128
_SUBLANE = 8


def _round_up(x, m):
    return ((x + m - 1) // m) * m


def _vmem_capacity_bytes():
    try:
        return int(pltpu.get_tpu_info().vmem_capacity_bytes)
    except Exception:
        return 64 * 1024 * 1024  # conservative default (v7x-sized VMEM)


# ---------------------------------------------------------------------------
# Tiled linear kernel: (M, K) @ (K, N) + bias [+ GELU], bf16 MXU / f32 accumulate
# ---------------------------------------------------------------------------
def _linear_kernel(x_ref, w_ref, b_ref, o_ref, *, act):
    acc = jnp.dot(x_ref[...], w_ref[...], preferred_element_type=jnp.float32)
    acc = acc + b_ref[...]                      # f32 epilogue (no bf16 VPU on v5e)
    if act == "gelu":
        # TODO(synk): PyTorch nn.GELU() is erf-exact; tanh approximation used in-kernel.
        acc = jax.nn.gelu(acc, approximate=True)
    o_ref[...] = acc.astype(o_ref.dtype)


def _pick_tm(M, K, Np, x_bytes, w_bytes, o_bytes):
    """Largest M tile whose double-buffered working set fits a per-generation budget."""
    cap = _vmem_capacity_bytes()                 # 128 MiB v5e/v6e, 64 MiB v7x
    budget = cap // 16                           # conservative working-set budget
    fixed = 2 * K * Np * w_bytes + 2 * Np * 4    # resident weight + bias buffers
    per_row = 2 * (K * x_bytes + Np * o_bytes)   # double-buffered x + out rows
    tm = (budget - fixed) // per_row if budget > fixed else _SUBLANE
    tm = int(max(_SUBLANE, min(tm, 1024)))
    tm = (tm // _SUBLANE) * _SUBLANE
    tm = min(tm, _round_up(M, _SUBLANE))
    return max(tm, _SUBLANE)


def linear_pallas(x2d, w, b, act=None):
    """y = x2d @ w + b (optional fused GELU). x2d:(M,K), w:(K,N), b:(N,) -> f32 (M,N)."""
    M, K = x2d.shape
    K2, N = w.shape
    assert K2 == K
    Np = _round_up(N, _LANE)                     # lane-dense output columns
    if Np != N:
        w = jnp.pad(w, ((0, 0), (0, Np - N)))
        b = jnp.pad(b, (0, Np - N))

    xb = x2d.astype(jnp.bfloat16)                # bf16 MXU inputs
    wb = w.astype(jnp.bfloat16)
    b2 = b.reshape(1, Np).astype(jnp.float32)

    tm = _pick_tm(M, K, Np, x_bytes=2, w_bytes=2, o_bytes=4)
    grid = (pl.cdiv(M, tm),)

    need = 2 * (tm * K * 2 + tm * Np * 4) + 2 * (K * Np * 2 + Np * 4)
    vmem_limit = int(min(max(2 * need + (4 << 20), 32 << 20), 48 << 20))

    cost = pl.CostEstimate(
        flops=int(2 * M * K * N),
        transcendentals=int(M * N if act == "gelu" else 0),
        bytes_accessed=int(M * K * 2 + K * Np * 2 + Np * 4 + M * Np * 4),
    )

    out = pl.pallas_call(
        functools.partial(_linear_kernel, act=act),
        out_shape=jax.ShapeDtypeStruct((M, Np), jnp.float32),
        grid_spec=pltpu.PrefetchScalarGridSpec(
            num_scalar_prefetch=0,
            grid=grid,
            in_specs=[
                pl.BlockSpec((tm, K), lambda i: (i, 0)),
                # Constant index_map: weight/bias fetched once and kept resident.
                pl.BlockSpec((K, Np), lambda i: (0, 0)),
                pl.BlockSpec((1, Np), lambda i: (0, 0)),
            ],
            out_specs=pl.BlockSpec((tm, Np), lambda i: (i, 0)),
        ),
        compiler_params=pltpu.CompilerParams(
            dimension_semantics=("parallel",),   # megacore-shardable on v7x
            vmem_limit_bytes=vmem_limit,
        ),
        cost_estimate=cost,
    )(xb, wb, b2)
    return out[:, :N] if Np != N else out


# ---------------------------------------------------------------------------
# LayerNorm kernel (row-tiled, f32)
# ---------------------------------------------------------------------------
def _layernorm_kernel(x_ref, g_ref, b_ref, o_ref, *, eps):
    x = x_ref[...].astype(jnp.float32)
    mu = jnp.mean(x, axis=-1, keepdims=True)
    xc = x - mu
    var = jnp.mean(xc * xc, axis=-1, keepdims=True)
    inv = jax.lax.rsqrt(var + eps)
    o_ref[...] = (xc * inv * g_ref[...] + b_ref[...]).astype(o_ref.dtype)


def layernorm_pallas(x2d, gamma, beta, eps=1e-6):
    M, D = x2d.shape
    tm = min(1024, _round_up(M, _SUBLANE))
    grid = (pl.cdiv(M, tm),)
    return pl.pallas_call(
        functools.partial(_layernorm_kernel, eps=eps),
        out_shape=jax.ShapeDtypeStruct((M, D), jnp.float32),
        grid_spec=pltpu.PrefetchScalarGridSpec(
            num_scalar_prefetch=0,
            grid=grid,
            in_specs=[
                pl.BlockSpec((tm, D), lambda i: (i, 0)),
                pl.BlockSpec((1, D), lambda i: (0, 0)),
                pl.BlockSpec((1, D), lambda i: (0, 0)),
            ],
            out_specs=pl.BlockSpec((tm, D), lambda i: (i, 0)),
        ),
        compiler_params=pltpu.CompilerParams(dimension_semantics=("parallel",)),
    )(x2d.astype(jnp.float32),
      gamma.reshape(1, D).astype(jnp.float32),
      beta.reshape(1, D).astype(jnp.float32))


# ---------------------------------------------------------------------------
# Multi-head attention core: softmax(q k^T * scale) v, one image per grid step
# ---------------------------------------------------------------------------
def _attention_kernel(q_ref, k_ref, v_ref, o_ref, *, scale):
    q = q_ref[...]
    k = k_ref[...]
    v = v_ref[...]
    s = jnp.einsum("hqd,hkd->hqk", q, k,
                   preferred_element_type=jnp.float32) * scale
    m = jnp.max(s, axis=-1, keepdims=True)
    p = jnp.exp(s - m)
    p = p * pl.reciprocal(jnp.sum(p, axis=-1, keepdims=True), approx=True)
    o = jnp.einsum("hqk,hkd->hqd", p.astype(v.dtype), v,
                   preferred_element_type=jnp.float32)
    o_ref[...] = o.astype(o_ref.dtype)


def attention_pallas(q, k, v, scale):
    B, H, S, hd = q.shape
    qb, kb, vb = (t.astype(jnp.bfloat16) for t in (q, k, v))
    spec = pl.BlockSpec((None, H, S, hd), lambda b: (b, 0, 0, 0))
    cost = pl.CostEstimate(
        flops=int(4 * B * H * S * S * hd),
        transcendentals=int(B * H * S * S),
        bytes_accessed=int(3 * B * H * S * hd * 2 + B * H * S * hd * 4),
    )
    return pl.pallas_call(
        functools.partial(_attention_kernel, scale=scale),
        out_shape=jax.ShapeDtypeStruct((B, H, S, hd), jnp.float32),
        grid_spec=pltpu.PrefetchScalarGridSpec(
            num_scalar_prefetch=0,
            grid=(B,),
            in_specs=[spec, spec, spec],
            out_specs=spec,
        ),
        compiler_params=pltpu.CompilerParams(dimension_semantics=("parallel",)),
        cost_estimate=cost,
    )(qb, kb, vb)


# ---------------------------------------------------------------------------
# PatchEmbed: stride==kernel Conv2d as (patches @ W + b)
# ---------------------------------------------------------------------------
def patch_embed_forward(x, conv_w, conv_b, patch_size):
    """x:(B,C,H,W) NCHW, conv_w:(E,C,p,p), conv_b:(E,) -> (B, N, E)."""
    B, C, H, W = x.shape
    p = patch_size
    E = conv_w.shape[0]
    hp, wp = H // p, W // p
    N = hp * wp
    # Cast to bf16 *before* the rearrange so the materialized patch copy is half-size
    # (the matmul consumes bf16 anyway).
    # TODO(synk): fuse this patch rearrange into the kernel (BlockSpec per (b, patch-row)
    # strip + in-VMEM reorder) to remove the extra HBM pass; general >2-D transposes are
    # not reliably lowerable in-kernel, so it currently stays in XLA glue.
    xp = x.astype(jnp.bfloat16).reshape(B, C, hp, p, wp, p)
    patches = jnp.transpose(xp, (0, 2, 4, 1, 3, 5)).reshape(B * N, C * p * p)
    w2d = conv_w.reshape(E, C * p * p).T          # K ordered (c, i, j) to match patches
    out = linear_pallas(patches, w2d, conv_b)     # (B*N, E) f32
    return out.reshape(B, N, E)


# ---------------------------------------------------------------------------
# Full VisionTransformer forward
# ---------------------------------------------------------------------------
def vit_forward(x, params, *, patch_size, n_heads):
    B = x.shape[0]
    x = patch_embed_forward(x, params["patch_w"], params["patch_b"], patch_size)  # (B,N,D)
    D = x.shape[-1]
    hd = D // n_heads
    cls = jnp.broadcast_to(params["cls_token"], (B, 1, D))
    x = jnp.concatenate([cls, x], axis=1)          # (B, S, D)
    x = x + params["pos_embed"]
    # TODO(synk): dropout layers (pos/attn/proj/mlp) are inference-mode identity here.
    S = x.shape[1]

    for blk in params["blocks"]:
        # ---- attention branch ----
        h = layernorm_pallas(x.reshape(B * S, D), blk["ln1_g"], blk["ln1_b"])
        qkv = linear_pallas(h, blk["qkv_w"], blk["qkv_b"])                 # (B*S, 3D)
        qkv = qkv.reshape(B, S, 3, n_heads, hd)
        qkv = jnp.transpose(qkv, (2, 0, 3, 1, 4))                          # (3,B,H,S,hd)
        q, k, v = qkv[0], qkv[1], qkv[2]
        attn = attention_pallas(q, k, v, scale=float(hd) ** -0.5)          # (B,H,S,hd)
        attn = jnp.transpose(attn, (0, 2, 1, 3)).reshape(B * S, D)
        x = x + linear_pallas(attn, blk["proj_w"], blk["proj_b"]).reshape(B, S, D)
        # ---- MLP branch ----
        h = layernorm_pallas(x.reshape(B * S, D), blk["ln2_g"], blk["ln2_b"])
        h = linear_pallas(h, blk["fc1_w"], blk["fc1_b"], act="gelu")
        h = linear_pallas(h, blk["fc2_w"], blk["fc2_b"])
        x = x + h.reshape(B, S, D)

    x = layernorm_pallas(x.reshape(B * S, D), params["norm_g"], params["norm_b"])
    return x.reshape(B, S, D)


# ---------------------------------------------------------------------------
# Pure-JAX reference (same bf16-input / f32-accumulate policy as the kernels)
# ---------------------------------------------------------------------------
def _mm_ref(a, b):
    return jnp.dot(a.astype(jnp.bfloat16), b.astype(jnp.bfloat16),
                   preferred_element_type=jnp.float32)


def _ln_ref(x, g, b, eps=1e-6):
    mu = jnp.mean(x, axis=-1, keepdims=True)
    var = jnp.mean((x - mu) ** 2, axis=-1, keepdims=True)
    return (x - mu) * jax.lax.rsqrt(var + eps) * g + b


def vit_reference(x, params, *, patch_size, n_heads):
    B, C, H, W = x.shape
    p = patch_size
    E = params["patch_w"].shape[0]
    conv = jax.lax.conv_general_dilated(
        x.astype(jnp.bfloat16), params["patch_w"].astype(jnp.bfloat16),
        window_strides=(p, p), padding="VALID",
        dimension_numbers=("NCHW", "OIHW", "NCHW"),
        preferred_element_type=jnp.float32)
    conv = conv + params["patch_b"][None, :, None, None]
    N = conv.shape[2] * conv.shape[3]
    xr = jnp.transpose(conv.reshape(B, E, N), (0, 2, 1))      # (B, N, E)
    D = E
    hd = D // n_heads
    cls = jnp.broadcast_to(params["cls_token"], (B, 1, D))
    xr = jnp.concatenate([cls, xr], axis=1) + params["pos_embed"]
    S = xr.shape[1]
    for blk in params["blocks"]:
        h = _ln_ref(xr, blk["ln1_g"], blk["ln1_b"])
        qkv = _mm_ref(h.reshape(B * S, D), blk["qkv_w"]) + blk["qkv_b"]
        qkv = jnp.transpose(qkv.reshape(B, S, 3, n_heads, hd), (2, 0, 3, 1, 4))
        q, k, v = qkv[0], qkv[1], qkv[2]
        s = jnp.einsum("bhqd,bhkd->bhqk", q.astype(jnp.bfloat16), k.astype(jnp.bfloat16),
                       preferred_element_type=jnp.float32) * (float(hd) ** -0.5)
        a = jax.nn.softmax(s, axis=-1)
        o = jnp.einsum("bhqk,bhkd->bhqd", a.astype(jnp.bfloat16), v.astype(jnp.bfloat16),
                       preferred_element_type=jnp.float32)
        o = jnp.transpose(o, (0, 2, 1, 3)).reshape(B * S, D)
        xr = xr + (_mm_ref(o, blk["proj_w"]) + blk["proj_b"]).reshape(B, S, D)
        h = _ln_ref(xr, blk["ln2_g"], blk["ln2_b"]).reshape(B * S, D)
        h = jax.nn.gelu(_mm_ref(h, blk["fc1_w"]) + blk["fc1_b"], approximate=True)
        h = _mm_ref(h, blk["fc2_w"]) + blk["fc2_b"]
        xr = xr + h.reshape(B, S, D)
    return _ln_ref(xr, params["norm_g"], params["norm_b"])


if __name__ == "__main__":
    # Small shapes consistent with the module.
    batch, in_channels, image_size = 2, 4, 16
    patch_size, embed_dim, depth, n_heads = 4, 32, 2, 4
    mlp_hidden = 4 * embed_dim
    n_patches = (image_size // patch_size) ** 2
    seq = n_patches + 1

    key = jax.random.PRNGKey(0)
    keys = jax.random.split(key, 4 + depth)
    kx, kpe, kcls, kpos = keys[0], keys[1], keys[2], keys[3]

    def uniform_linear(k, fan_in, shape_w, shape_b):
        kw, kb = jax.random.split(k)
        bound = float(fan_in) ** -0.5
        w = jax.random.uniform(kw, shape_w, minval=-bound, maxval=bound, dtype=jnp.float32)
        b = jax.random.uniform(kb, shape_b, minval=-bound, maxval=bound, dtype=jnp.float32)
        return w, b

    x = jax.random.normal(kx, (batch, in_channels, image_size, image_size), dtype=jnp.float32)

    patch_w, patch_b = uniform_linear(
        kpe, in_channels * patch_size * patch_size,
        (embed_dim, in_channels, patch_size, patch_size), (embed_dim,))

    params = {
        "patch_w": patch_w,
        "patch_b": patch_b,
        "cls_token": 0.02 * jax.random.normal(kcls, (1, 1, embed_dim), dtype=jnp.float32),
        "pos_embed": 0.02 * jax.random.normal(kpos, (1, seq, embed_dim), dtype=jnp.float32),
        "blocks": [],
        "norm_g": jnp.ones((embed_dim,), jnp.float32),
        "norm_b": jnp.zeros((embed_dim,), jnp.float32),
    }
    for d in range(depth):
        kq, kp, k1, k2, kg = jax.random.split(keys[4 + d], 5)
        qkv_w, qkv_b = uniform_linear(kq, embed_dim, (embed_dim, 3 * embed_dim), (3 * embed_dim,))
        proj_w, proj_b = uniform_linear(kp, embed_dim, (embed_dim, embed_dim), (embed_dim,))
        fc1_w, fc1_b = uniform_linear(k1, embed_dim, (embed_dim, mlp_hidden), (mlp_hidden,))
        fc2_w, fc2_b = uniform_linear(k2, mlp_hidden, (mlp_hidden, embed_dim), (embed_dim,))
        g1, g2 = jax.random.split(kg)
        params["blocks"].append({
            "ln1_g": 1.0 + 0.1 * jax.random.normal(g1, (embed_dim,), dtype=jnp.float32),
            "ln1_b": 0.1 * jax.random.normal(g2, (embed_dim,), dtype=jnp.float32),
            "qkv_w": qkv_w, "qkv_b": qkv_b,
            "proj_w": proj_w, "proj_b": proj_b,
            "ln2_g": jnp.ones((embed_dim,), jnp.float32),
            "ln2_b": jnp.zeros((embed_dim,), jnp.float32),
            "fc1_w": fc1_w, "fc1_b": fc1_b,
            "fc2_w": fc2_w, "fc2_b": fc2_b,
        })

    fwd = jax.jit(functools.partial(vit_forward, patch_size=patch_size, n_heads=n_heads))
    out = jax.block_until_ready(fwd(x, params))
    assert out.shape == (batch, seq, embed_dim), out.shape
    assert bool(jnp.all(jnp.isfinite(out)))

    ref = jax.block_until_ready(
        vit_reference(x, params, patch_size=patch_size, n_heads=n_heads))
    max_err = float(jnp.max(jnp.abs(out - ref)))
    assert jnp.allclose(out, ref, atol=2e-2, rtol=2e-2), f"max abs err {max_err}"

    print("KERNEL_OK")
</pallas_src>

<mosaic_0001>
module attributes {stable_mosaic.version = 11 : i64} {
  func.func @_linear_kernel(%arg0: i32, %arg1: memref<32x64xbf16, #tpu.memory_space<vmem>>, %arg2: memref<64x128xbf16, #tpu.memory_space<vmem>>, %arg3: memref<1x128xf32, #tpu.memory_space<vmem>>, %arg4: memref<32x128xf32, #tpu.memory_space<vmem>>) attributes {dimension_semantics = [#tpu.dimension_semantics<parallel>], iteration_bounds = array<i64: 1>, scalar_prefetch = 0 : i64, scratch_operands = 0 : i64, tpu.core_type = #tpu.core_type<tc>, window_params = [{transform_indices = @transform_0, window_bounds = array<i64: 32, 64>}, {pipeline_mode = #tpu.pipeline_mode<synchronous>, transform_indices = @transform_1, window_bounds = array<i64: 64, 128>}, {pipeline_mode = #tpu.pipeline_mode<synchronous>, transform_indices = @transform_2, window_bounds = array<i64: 1, 128>}, {transform_indices = @transform_3, window_bounds = array<i64: 32, 128>}]} {
    %c0 = arith.constant 0 : index
    %c0_0 = arith.constant 0 : index
    %0 = vector.load %arg1[%c0, %c0_0] : memref<32x64xbf16, #tpu.memory_space<vmem>>, vector<32x64xbf16>
    %c0_1 = arith.constant 0 : index
    %c0_2 = arith.constant 0 : index
    %1 = vector.load %arg2[%c0_1, %c0_2] : memref<64x128xbf16, #tpu.memory_space<vmem>>, vector<64x128xbf16>
    %cst = arith.constant dense<0.000000e+00> : vector<32x128xf32>
    %2 = tpu.matmul %0, %1, %cst {dimension_numbers = #tpu.dot_dimension_numbers<[1], [0], [0], [1], [0, 0, 1, 1], [], []>} : vector<32x64xbf16>, vector<64x128xbf16>, vector<32x128xf32> -> vector<32x128xf32>
    %c0_3 = arith.constant 0 : index
    %c0_4 = arith.constant 0 : index
    %3 = vector.load %arg3[%c0_3, %c0_4] : memref<1x128xf32, #tpu.memory_space<vmem>>, vector<1x128xf32>
    %4 = vector.broadcast %3 : vector<1x128xf32> to vector<32x128xf32>
    %5 = arith.addf %2, %4 : vector<32x128xf32>
    %c0_5 = arith.constant 0 : index
    %c0_6 = arith.constant 0 : index
    %6 = vector.load %arg4[%c0_5, %c0_6] : memref<32x128xf32, #tpu.memory_space<vmem>>, vector<32x128xf32>
    tpu.vector_store %arg4[%c0_5, %c0_6], %5 {strides = array<i32>} : memref<32x128xf32, #tpu.memory_space<vmem>>, vector<32x128xf32>,
    return
  }
  func.func @transform_0(%arg0: i32) -> (i32, i32) {
    %c0_i32 = arith.constant 0 : i32
    %c0_i32_0 = arith.constant 0 : i32
    return %arg0, %c0_i32 : i32, i32
  }
  func.func @transform_1(%arg0: i32) -> (i32, i32) {
    %c0_i32 = arith.constant 0 : i32
    %c0_i32_0 = arith.constant 0 : i32
    %c0_i32_1 = arith.constant 0 : i32
    return %c0_i32, %c0_i32_0 : i32, i32
  }
  func.func @transform_2(%arg0: i32) -> (i32, i32) {
    %c0_i32 = arith.constant 0 : i32
    %c0_i32_0 = arith.constant 0 : i32
    %c0_i32_1 = arith.constant 0 : i32
    return %c0_i32, %c0_i32_0 : i32, i32
  }
  func.func @transform_3(%arg0: i32) -> (i32, i32) {
    %c0_i32 = arith.constant 0 : i32
    %c0_i32_0 = arith.constant 0 : i32
    return %arg0, %c0_i32 : i32, i32
  }
}

module attributes {stable_mosaic.version = 11 : i64} {
  func.func @_layernorm_kernel(%arg0: i32, %arg1: memref<40x32xf32, #tpu.memory_space<vmem>>, %arg2: memref<1x32xf32, #tpu.memory_space<vmem>>, %arg3: memref<1x32xf32, #tpu.memory_space<vmem>>, %arg4: memref<40x32xf32, #tpu.memory_space<vmem>>) attributes {dimension_semantics = [#tpu.dimension_semantics<parallel>], iteration_bounds = array<i64: 1>, scalar_prefetch = 0 : i64, scratch_operands = 0 : i64, tpu.core_type = #tpu.core_type<tc>, window_params = [{transform_indices = @transform_0, window_bounds = array<i64: 40, 32>}, {pipeline_mode = #tpu.pipeline_mode<synchronous>, transform_indices = @transform_1, window_bounds = array<i64: 1, 32>}, {pipeline_mode = #tpu.pipeline_mode<synchronous>, transform_indices = @transform_2, window_bounds = array<i64: 1, 32>}, {transform_indices = @transform_3, window_bounds = array<i64: 40, 32>}]} {
    %c0 = arith.constant 0 : index
    %c0_0 = arith.constant 0 : index
    %0 = vector.load %arg1[%c0, %c0_0] : memref<40x32xf32, #tpu.memory_space<vmem>>, vector<40x32xf32>
    %cst = arith.constant dense<0.000000e+00> : vector<40xf32>
    %1 = vector.multi_reduction <add>, %0, %cst [1] : vector<40x32xf32> to vector<40xf32>
    %2 = vector.shape_cast %1 : vector<40xf32> to vector<40x1xf32>
    %cst_1 = arith.constant 3.200000e+01 : f32
    %3 = vector.broadcast %cst_1 : f32 to vector<40x1xf32>
    %4 = arith.divf %2, %3 : vector<40x1xf32>
    %5 = vector.broadcast %4 : vector<40x1xf32> to vector<40x32xf32>
    %6 = arith.subf %0, %5 : vector<40x32xf32>
    %7 = arith.mulf %6, %6 : vector<40x32xf32>
    %cst_2 = arith.constant dense<0.000000e+00> : vector<40xf32>
    %8 = vector.multi_reduction <add>, %7, %cst_2 [1] : vector<40x32xf32> to vector<40xf32>
    %9 = vector.shape_cast %8 : vector<40xf32> to vector<40x1xf32>
    %cst_3 = arith.constant 3.200000e+01 : f32
    %10 = vector.broadcast %cst_3 : f32 to vector<40x1xf32>
    %11 = arith.divf %9, %10 : vector<40x1xf32>
    %cst_4 = arith.constant 9.99999997E-7 : f32
    %12 = vector.broadcast %cst_4 : f32 to vector<40x1xf32>
    %13 = arith.addf %11, %12 : vector<40x1xf32>
    %14 = math.rsqrt %13 : vector<40x1xf32>
    %15 = vector.broadcast %14 : vector<40x1xf32> to vector<40x32xf32>
    %16 = arith.mulf %6, %15 : vector<40x32xf32>
    %c0_5 = arith.constant 0 : index
    %c0_6 = arith.constant 0 : index
    %17 = vector.load %arg2[%c0_5, %c0_6] : memref<1x32xf32, #tpu.memory_space<vmem>>, vector<1x32xf32>
    %18 = vector.broadcast %17 : vector<1x32xf32> to vector<40x32xf32>
    %19 = arith.mulf %16, %18 : vector<40x32xf32>
    %c0_7 = arith.constant 0 : index
    %c0_8 = arith.constant 0 : index
    %20 = vector.load %arg3[%c0_7, %c0_8] : memref<1x32xf32, #tpu.memory_space<vmem>>, vector<1x32xf32>
    %21 = vector.broadcast %20 : vector<1x32xf32> to vector<40x32xf32>
    %22 = arith.addf %19, %21 : vector<40x32xf32>
    %c0_9 = arith.constant 0 : index
    %c0_10 = arith.constant 0 : index
    %23 = vector.load %arg4[%c0_9, %c0_10] : memref<40x32xf32, #tpu.memory_space<vmem>>, vector<40x32xf32>
    tpu.vector_store %arg4[%c0_9, %c0_10], %22 {strides = array<i32>} : memref<40x32xf32, #tpu.memory_space<vmem>>, vector<40x32xf32>,
    return
  }
  func.func @transform_0(%arg0: i32) -> (i32, i32) {
    %c0_i32 = arith.constant 0 : i32
    %c0_i32_0 = arith.constant 0 : i32
    return %arg0, %c0_i32 : i32, i32
  }
  func.func @transform_1(%arg0: i32) -> (i32, i32) {
    %c0_i32 = arith.constant 0 : i32
    %c0_i32_0 = arith.constant 0 : i32
    %c0_i32_1 = arith.constant 0 : i32
    return %c0_i32, %c0_i32_0 : i32, i32
  }
  func.func @transform_2(%arg0: i32) -> (i32, i32) {
    %c0_i32 = arith.constant 0 : i32
    %c0_i32_0 = arith.constant 0 : i32
    %c0_i32_1 = arith.constant 0 : i32
    return %c0_i32, %c0_i32_0 : i32, i32
  }
  func.func @transform_3(%arg0: i32) -> (i32, i32) {
    %c0_i32 = arith.constant 0 : i32
    %c0_i32_0 = arith.constant 0 : i32
    return %arg0, %c0_i32 : i32, i32
  }
}

module attributes {stable_mosaic.version = 11 : i64} {
  func.func @_linear_kernel(%arg0: i32, %arg1: memref<40x32xbf16, #tpu.memory_space<vmem>>, %arg2: memref<32x128xbf16, #tpu.memory_space<vmem>>, %arg3: memref<1x128xf32, #tpu.memory_space<vmem>>, %arg4: memref<40x128xf32, #tpu.memory_space<vmem>>) attributes {dimension_semantics = [#tpu.dimension_semantics<parallel>], iteration_bounds = array<i64: 1>, scalar_prefetch = 0 : i64, scratch_operands = 0 : i64, tpu.core_type = #tpu.core_type<tc>, window_params = [{transform_indices = @transform_0, window_bounds = array<i64: 40, 32>}, {pipeline_mode = #tpu.pipeline_mode<synchronous>, transform_indices = @transform_1, window_bounds = array<i64: 32, 128>}, {pipeline_mode = #tpu.pipeline_mode<synchronous>, transform_indices = @transform_2, window_bounds = array<i64: 1, 128>}, {transform_indices = @transform_3, window_bounds = array<i64: 40, 128>}]} {
    %c0 = arith.constant 0 : index
    %c0_0 = arith.constant 0 : index
    %0 = vector.load %arg1[%c0, %c0_0] : memref<40x32xbf16, #tpu.memory_space<vmem>>, vector<40x32xbf16>
    %c0_1 = arith.constant 0 : index
    %c0_2 = arith.constant 0 : index
    %1 = vector.load %arg2[%c0_1, %c0_2] : memref<32x128xbf16, #tpu.memory_space<vmem>>, vector<32x128xbf16>
    %cst = arith.constant dense<0.000000e+00> : vector<40x128xf32>
    %2 = tpu.matmul %0, %1, %cst {dimension_numbers = #tpu.dot_dimension_numbers<[1], [0], [0], [1], [0, 0, 1, 1], [], []>} : vector<40x32xbf16>, vector<32x128xbf16>, vector<40x128xf32> -> vector<40x128xf32>
    %c0_3 = arith.constant 0 : index
    %c0_4 = arith.constant 0 : index
    %3 = vector.load %arg3[%c0_3, %c0_4] : memref<1x128xf32, #tpu.memory_space<vmem>>, vector<1x128xf32>
    %4 = vector.broadcast %3 : vector<1x128xf32> to vector<40x128xf32>
    %5 = arith.addf %2, %4 : vector<40x128xf32>
    %c0_5 = arith.constant 0 : index
    %c0_6 = arith.constant 0 : index
    %6 = vector.load %arg4[%c0_5, %c0_6] : memref<40x128xf32, #tpu.memory_space<vmem>>, vector<40x128xf32>
    tpu.vector_store %arg4[%c0_5, %c0_6], %5 {strides = array<i32>} : memref<40x128xf32, #tpu.memory_space<vmem>>, vector<40x128xf32>,
    return
  }
  func.func @transform_0(%arg0: i32) -> (i32, i32) {
    %c0_i32 = arith.constant 0 : i32
    %c0_i32_0 = arith.constant 0 : i32
    return %arg0, %c0_i32 : i32, i32
  }
  func.func @transform_1(%arg0: i32) -> (i32, i32) {
    %c0_i32 = arith.constant 0 : i32
    %c0_i32_0 = arith.constant 0 : i32
    %c0_i32_1 = arith.constant 0 : i32
    return %c0_i32, %c0_i32_0 : i32, i32
  }
  func.func @transform_2(%arg0: i32) -> (i32, i32) {
    %c0_i32 = arith.constant 0 : i32
    %c0_i32_0 = arith.constant 0 : i32
    %c0_i32_1 = arith.constant 0 : i32
    return %c0_i32, %c0_i32_0 : i32, i32
  }
  func.func @transform_3(%arg0: i32) -> (i32, i32) {
    %c0_i32 = arith.constant 0 : i32
    %c0_i32_0 = arith.constant 0 : i32
    return %arg0, %c0_i32 : i32, i32
  }
}

module attributes {stable_mosaic.version = 11 : i64} {
  func.func @_attention_kernel(%arg0: i32, %arg1: memref<1x4x17x8xbf16, #tpu.memory_space<vmem>>, %arg2: memref<1x4x17x8xbf16, #tpu.memory_space<vmem>>, %arg3: memref<1x4x17x8xbf16, #tpu.memory_space<vmem>>, %arg4: memref<1x4x17x8xf32, #tpu.memory_space<vmem>>) attributes {dimension_semantics = [#tpu.dimension_semantics<parallel>], iteration_bounds = array<i64: 2>, scalar_prefetch = 0 : i64, scratch_operands = 0 : i64, tpu.core_type = #tpu.core_type<tc>, window_params = [{transform_indices = @transform_0, window_bounds = array<i64: 1, 4, 17, 8>}, {transform_indices = @transform_1, window_bounds = array<i64: 1, 4, 17, 8>}, {transform_indices = @transform_2, window_bounds = array<i64: 1, 4, 17, 8>}, {transform_indices = @transform_3, window_bounds = array<i64: 1, 4, 17, 8>}]} {
    %c0 = arith.constant 0 : index
    %c0_0 = arith.constant 0 : index
    %c0_1 = arith.constant 0 : index
    %c0_2 = arith.constant 0 : index
    %0 = vector.load %arg1[%c0, %c0_0, %c0_1, %c0_2] : memref<1x4x17x8xbf16, #tpu.memory_space<vmem>>, vector<1x4x17x8xbf16>
    %1 = vector.shape_cast %0 : vector<1x4x17x8xbf16> to vector<4x17x8xbf16>
    %c0_3 = arith.constant 0 : index
    %c0_4 = arith.constant 0 : index
    %c0_5 = arith.constant 0 : index
    %c0_6 = arith.constant 0 : index
    %2 = vector.load %arg2[%c0_3, %c0_4, %c0_5, %c0_6] : memref<1x4x17x8xbf16, #tpu.memory_space<vmem>>, vector<1x4x17x8xbf16>
    %3 = vector.shape_cast %2 : vector<1x4x17x8xbf16> to vector<4x17x8xbf16>
    %c0_7 = arith.constant 0 : index
    %c0_8 = arith.constant 0 : index
    %c0_9 = arith.constant 0 : index
    %c0_10 = arith.constant 0 : index
    %4 = vector.load %arg3[%c0_7, %c0_8, %c0_9, %c0_10] : memref<1x4x17x8xbf16, #tpu.memory_space<vmem>>, vector<1x4x17x8xbf16>
    %5 = vector.shape_cast %4 : vector<1x4x17x8xbf16> to vector<4x17x8xbf16>
    "tpu.trace_start"() <{level = 10 : i32, message = "hqd,hkd->hqk"}> : () -> ()
    %cst = arith.constant dense<0.000000e+00> : vector<4x17x17xf32>
    %6 = tpu.matmul %1, %3, %cst {dimension_numbers = #tpu.dot_dimension_numbers<[2], [2], [1], [1], [0, 0, 0, 1, 1, 1], [0], [0]>} : vector<4x17x8xbf16>, vector<4x17x8xbf16>, vector<4x17x17xf32> -> vector<4x17x17xf32>
    "tpu.trace_stop"() : () -> ()
    %cst_11 = arith.constant 0.353553385 : f32
    %7 = vector.broadcast %cst_11 : f32 to vector<4x17x17xf32>
    %8 = arith.mulf %6, %7 : vector<4x17x17xf32>
    %cst_12 = arith.constant dense<0xFF800000> : vector<4x17xf32>
    %9 = vector.multi_reduction <maximumf>, %8, %cst_12 [2] : vector<4x17x17xf32> to vector<4x17xf32>
    %10 = vector.shape_cast %9 : vector<4x17xf32> to vector<4x17x1xf32>
    %11 = vector.broadcast %10 : vector<4x17x1xf32> to vector<4x17x17xf32>
    %12 = arith.subf %8, %11 : vector<4x17x17xf32>
    %13 = math.exp %12 : vector<4x17x17xf32>
    %cst_13 = arith.constant dense<0.000000e+00> : vector<4x17xf32>
    %14 = vector.multi_reduction <add>, %13, %cst_13 [2] : vector<4x17x17xf32> to vector<4x17xf32>
    %15 = vector.shape_cast %14 : vector<4x17xf32> to vector<4x17x1xf32>
    %16 = tpu.reciprocal %15 {approx = true} : vector<4x17x1xf32> -> vector<4x17x1xf32>
    %17 = vector.broadcast %16 : vector<4x17x1xf32> to vector<4x17x17xf32>
    %18 = arith.mulf %13, %17 : vector<4x17x17xf32>
    %19 = arith.truncf %18 : vector<4x17x17xf32> to vector<4x17x17xbf16>
    "tpu.trace_start"() <{level = 10 : i32, message = "hqk,hkd->hqd"}> : () -> ()
    %cst_14 = arith.constant dense<0.000000e+00> : vector<4x17x8xf32>
    %20 = tpu.matmul %19, %5, %cst_14 {dimension_numbers = #tpu.dot_dimension_numbers<[2], [1], [1], [2], [0, 0, 0, 1, 1, 2], [0], [0]>} : vector<4x17x17xbf16>, vector<4x17x8xbf16>, vector<4x17x8xf32> -> vector<4x17x8xf32>
    "tpu.trace_stop"() : () -> ()
    %c0_15 = arith.constant 0 : index
    %c0_16 = arith.constant 0 : index
    %c0_17 = arith.constant 0 : index
    %c0_18 = arith.constant 0 : index
    %21 = vector.load %arg4[%c0_15, %c0_16, %c0_17, %c0_18] : memref<1x4x17x8xf32, #tpu.memory_space<vmem>>, vector<1x4x17x8xf32>
    %22 = vector.shape_cast %21 : vector<1x4x17x8xf32> to vector<4x17x8xf32>
    %23 = vector.shape_cast %20 : vector<4x17x8xf32> to vector<1x4x17x8xf32>
    tpu.vector_store %arg4[%c0_15, %c0_16, %c0_17, %c0_18], %23 {strides = array<i32>} : memref<1x4x17x8xf32, #tpu.memory_space<vmem>>, vector<1x4x17x8xf32>,
    return
  }
  func.func @transform_0(%arg0: i32) -> (i32, i32, i32, i32) {
    %c0_i32 = arith.constant 0 : i32
    %c0_i32_0 = arith.constant 0 : i32
    %c0_i32_1 = arith.constant 0 : i32
    %c0_i32_2 = arith.constant 0 : i32
    return %arg0, %c0_i32, %c0_i32_0, %c0_i32_1 : i32, i32, i32, i32
  }
  func.func @transform_1(%arg0: i32) -> (i32, i32, i32, i32) {
    %c0_i32 = arith.constant 0 : i32
    %c0_i32_0 = arith.constant 0 : i32
    %c0_i32_1 = arith.constant 0 : i32
    %c0_i32_2 = arith.constant 0 : i32
    return %arg0, %c0_i32, %c0_i32_0, %c0_i32_1 : i32, i32, i32, i32
  }
  func.func @transform_2(%arg0: i32) -> (i32, i32, i32, i32) {
    %c0_i32 = arith.constant 0 : i32
    %c0_i32_0 = arith.constant 0 : i32
    %c0_i32_1 = arith.constant 0 : i32
    %c0_i32_2 = arith.constant 0 : i32
    return %arg0, %c0_i32, %c0_i32_0, %c0_i32_1 : i32, i32, i32, i32
  }
  func.func @transform_3(%arg0: i32) -> (i32, i32, i32, i32) {
    %c0_i32 = arith.constant 0 : i32
    %c0_i32_0 = arith.constant 0 : i32
    %c0_i32_1 = arith.constant 0 : i32
    %c0_i32_2 = arith.constant 0 : i32
    return %arg0, %c0_i32, %c0_i32_0, %c0_i32_1 : i32, i32, i32, i32
  }
}

module attributes {stable_mosaic.version = 11 : i64} {
  func.func @_linear_kernel(%arg0: i32, %arg1: memref<40x32xbf16, #tpu.memory_space<vmem>>, %arg2: memref<32x128xbf16, #tpu.memory_space<vmem>>, %arg3: memref<1x128xf32, #tpu.memory_space<vmem>>, %arg4: memref<40x128xf32, #tpu.memory_space<vmem>>) attributes {dimension_semantics = [#tpu.dimension_semantics<parallel>], iteration_bounds = array<i64: 1>, scalar_prefetch = 0 : i64, scratch_operands = 0 : i64, tpu.core_type = #tpu.core_type<tc>, window_params = [{transform_indices = @transform_0, window_bounds = array<i64: 40, 32>}, {pipeline_mode = #tpu.pipeline_mode<synchronous>, transform_indices = @transform_1, window_bounds = array<i64: 32, 128>}, {pipeline_mode = #tpu.pipeline_mode<synchronous>, transform_indices = @transform_2, window_bounds = array<i64: 1, 128>}, {transform_indices = @transform_3, window_bounds = array<i64: 40, 128>}]} {
    %c0 = arith.constant 0 : index
    %c0_0 = arith.constant 0 : index
    %0 = vector.load %arg1[%c0, %c0_0] : memref<40x32xbf16, #tpu.memory_space<vmem>>, vector<40x32xbf16>
    %c0_1 = arith.constant 0 : index
    %c0_2 = arith.constant 0 : index
    %1 = vector.load %arg2[%c0_1, %c0_2] : memref<32x128xbf16, #tpu.memory_space<vmem>>, vector<32x128xbf16>
    %cst = arith.constant dense<0.000000e+00> : vector<40x128xf32>
    %2 = tpu.matmul %0, %1, %cst {dimension_numbers = #tpu.dot_dimension_numbers<[1], [0], [0], [1], [0, 0, 1, 1], [], []>} : vector<40x32xbf16>, vector<32x128xbf16>, vector<40x128xf32> -> vector<40x128xf32>
    %c0_3 = arith.constant 0 : index
    %c0_4 = arith.constant 0 : index
    %3 = vector.load %arg3[%c0_3, %c0_4] : memref<1x128xf32, #tpu.memory_space<vmem>>, vector<1x128xf32>
    %4 = vector.broadcast %3 : vector<1x128xf32> to vector<40x128xf32>
    %5 = arith.addf %2, %4 : vector<40x128xf32>
    %c0_5 = arith.constant 0 : index
    %c0_6 = arith.constant 0 : index
    %6 = vector.load %arg4[%c0_5, %c0_6] : memref<40x128xf32, #tpu.memory_space<vmem>>, vector<40x128xf32>
    tpu.vector_store %arg4[%c0_5, %c0_6], %5 {strides = array<i32>} : memref<40x128xf32, #tpu.memory_space<vmem>>, vector<40x128xf32>,
    return
  }
  func.func @transform_0(%arg0: i32) -> (i32, i32) {
    %c0_i32 = arith.constant 0 : i32
    %c0_i32_0 = arith.constant 0 : i32
    return %arg0, %c0_i32 : i32, i32
  }
  func.func @transform_1(%arg0: i32) -> (i32, i32) {
    %c0_i32 = arith.constant 0 : i32
    %c0_i32_0 = arith.constant 0 : i32
    %c0_i32_1 = arith.constant 0 : i32
    return %c0_i32, %c0_i32_0 : i32, i32
  }
  func.func @transform_2(%arg0: i32) -> (i32, i32) {
    %c0_i32 = arith.constant 0 : i32
    %c0_i32_0 = arith.constant 0 : i32
    %c0_i32_1 = arith.constant 0 : i32
    return %c0_i32, %c0_i32_0 : i32, i32
  }
  func.func @transform_3(%arg0: i32) -> (i32, i32) {
    %c0_i32 = arith.constant 0 : i32
    %c0_i32_0 = arith.constant 0 : i32
    return %arg0, %c0_i32 : i32, i32
  }
}

module attributes {stable_mosaic.version = 11 : i64} {
  func.func @_linear_kernel(%arg0: i32, %arg1: memref<40x32xbf16, #tpu.memory_space<vmem>>, %arg2: memref<32x128xbf16, #tpu.memory_space<vmem>>, %arg3: memref<1x128xf32, #tpu.memory_space<vmem>>, %arg4: memref<40x128xf32, #tpu.memory_space<vmem>>) attributes {dimension_semantics = [#tpu.dimension_semantics<parallel>], iteration_bounds = array<i64: 1>, scalar_prefetch = 0 : i64, scratch_operands = 0 : i64, tpu.core_type = #tpu.core_type<tc>, window_params = [{transform_indices = @transform_0, window_bounds = array<i64: 40, 32>}, {pipeline_mode = #tpu.pipeline_mode<synchronous>, transform_indices = @transform_1, window_bounds = array<i64: 32, 128>}, {pipeline_mode = #tpu.pipeline_mode<synchronous>, transform_indices = @transform_2, window_bounds = array<i64: 1, 128>}, {transform_indices = @transform_3, window_bounds = array<i64: 40, 128>}]} {
    %c0 = arith.constant 0 : index
    %c0_0 = arith.constant 0 : index
    %0 = vector.load %arg1[%c0, %c0_0] : memref<40x32xbf16, #tpu.memory_space<vmem>>, vector<40x32xbf16>
    %c0_1 = arith.constant 0 : index
    %c0_2 = arith.constant 0 : index
    %1 = vector.load %arg2[%c0_1, %c0_2] : memref<32x128xbf16, #tpu.memory_space<vmem>>, vector<32x128xbf16>
    %cst = arith.constant dense<0.000000e+00> : vector<40x128xf32>
    %2 = tpu.matmul %0, %1, %cst {dimension_numbers = #tpu.dot_dimension_numbers<[1], [0], [0], [1], [0, 0, 1, 1], [], []>} : vector<40x32xbf16>, vector<32x128xbf16>, vector<40x128xf32> -> vector<40x128xf32>
    %c0_3 = arith.constant 0 : index
    %c0_4 = arith.constant 0 : index
    %3 = vector.load %arg3[%c0_3, %c0_4] : memref<1x128xf32, #tpu.memory_space<vmem>>, vector<1x128xf32>
    %4 = vector.broadcast %3 : vector<1x128xf32> to vector<40x128xf32>
    %5 = arith.addf %2, %4 : vector<40x128xf32>
    %6 = arith.mulf %5, %5 : vector<40x128xf32>
    %7 = arith.mulf %5, %6 : vector<40x128xf32>
    %cst_5 = arith.constant 4.471500e-02 : f32
    %8 = vector.broadcast %cst_5 : f32 to vector<40x128xf32>
    %9 = arith.mulf %8, %7 : vector<40x128xf32>
    %10 = arith.addf %5, %9 : vector<40x128xf32>
    %cst_6 = arith.constant 0.797884583 : f32
    %11 = vector.broadcast %cst_6 : f32 to vector<40x128xf32>
    %12 = arith.mulf %11, %10 : vector<40x128xf32>
    %13 = math.tanh %12 : vector<40x128xf32>
    %cst_7 = arith.constant 1.000000e+00 : f32
    %14 = vector.broadcast %cst_7 : f32 to vector<40x128xf32>
    %15 = arith.addf %14, %13 : vector<40x128xf32>
    %cst_8 = arith.constant 5.000000e-01 : f32
    %16 = vector.broadcast %cst_8 : f32 to vector<40x128xf32>
    %17 = arith.mulf %16, %15 : vector<40x128xf32>
    %18 = arith.mulf %5, %17 : vector<40x128xf32>
    %c0_9 = arith.constant 0 : index
    %c0_10 = arith.constant 0 : index
    %19 = vector.load %arg4[%c0_9, %c0_10] : memref<40x128xf32, #tpu.memory_space<vmem>>, vector<40x128xf32>
    tpu.vector_store %arg4[%c0_9, %c0_10], %18 {strides = array<i32>} : memref<40x128xf32, #tpu.memory_space<vmem>>, vector<40x128xf32>,
    return
  }
  func.func @transform_0(%arg0: i32) -> (i32, i32) {
    %c0_i32 = arith.constant 0 : i32
    %c0_i32_0 = arith.constant 0 : i32
    return %arg0, %c0_i32 : i32, i32
  }
  func.func @transform_1(%arg0: i32) -> (i32, i32) {
    %c0_i32 = arith.constant 0 : i32
    %c0_i32_0 = arith.constant 0 : i32
    %c0_i32_1 = arith.constant 0 : i32
    return %c0_i32, %c0_i32_0 : i32, i32
  }
  func.func @transform_2(%arg0: i32) -> (i32, i32) {
    %c0_i32 = arith.constant 0 : i32
    %c0_i32_0 = arith.constant 0 : i32
    %c0_i32_1 = arith.constant 0 : i32
    return %c0_i32, %c0_i32_0 : i32, i32
  }
  func.func @transform_3(%arg0: i32) -> (i32, i32) {
    %c0_i32 = arith.constant 0 : i32
    %c0_i32_0 = arith.constant 0 : i32
    return %arg0, %c0_i32 : i32, i32
  }
}

module attributes {stable_mosaic.version = 11 : i64} {
  func.func @_linear_kernel(%arg0: i32, %arg1: memref<40x128xbf16, #tpu.memory_space<vmem>>, %arg2: memref<128x128xbf16, #tpu.memory_space<vmem>>, %arg3: memref<1x128xf32, #tpu.memory_space<vmem>>, %arg4: memref<40x128xf32, #tpu.memory_space<vmem>>) attributes {dimension_semantics = [#tpu.dimension_semantics<parallel>], iteration_bounds = array<i64: 1>, scalar_prefetch = 0 : i64, scratch_operands = 0 : i64, tpu.core_type = #tpu.core_type<tc>, window_params = [{transform_indices = @transform_0, window_bounds = array<i64: 40, 128>}, {pipeline_mode = #tpu.pipeline_mode<synchronous>, transform_indices = @transform_1, window_bounds = array<i64: 128, 128>}, {pipeline_mode = #tpu.pipeline_mode<synchronous>, transform_indices = @transform_2, window_bounds = array<i64: 1, 128>}, {transform_indices = @transform_3, window_bounds = array<i64: 40, 128>}]} {
    %c0 = arith.constant 0 : index
    %c0_0 = arith.constant 0 : index
    %0 = vector.load %arg1[%c0, %c0_0] : memref<40x128xbf16, #tpu.memory_space<vmem>>, vector<40x128xbf16>
    %c0_1 = arith.constant 0 : index
    %c0_2 = arith.constant 0 : index
    %1 = vector.load %arg2[%c0_1, %c0_2] : memref<128x128xbf16, #tpu.memory_space<vmem>>, vector<128x128xbf16>
    %cst = arith.constant dense<0.000000e+00> : vector<40x128xf32>
    %2 = tpu.matmul %0, %1, %cst {dimension_numbers = #tpu.dot_dimension_numbers<[1], [0], [0], [1], [0, 0, 1, 1], [], []>} : vector<40x128xbf16>, vector<128x128xbf16>, vector<40x128xf32> -> vector<40x128xf32>
    %c0_3 = arith.constant 0 : index
    %c0_4 = arith.constant 0 : index
    %3 = vector.load %arg3[%c0_3, %c0_4] : memref<1x128xf32, #tpu.memory_space<vmem>>, vector<1x128xf32>
    %4 = vector.broadcast %3 : vector<1x128xf32> to vector<40x128xf32>
    %5 = arith.addf %2, %4 : vector<40x128xf32>
    %c0_5 = arith.constant 0 : index
    %c0_6 = arith.constant 0 : index
    %6 = vector.load %arg4[%c0_5, %c0_6] : memref<40x128xf32, #tpu.memory_space<vmem>>, vector<40x128xf32>
    tpu.vector_store %arg4[%c0_5, %c0_6], %5 {strides = array<i32>} : memref<40x128xf32, #tpu.memory_space<vmem>>, vector<40x128xf32>,
    return
  }
  func.func @transform_0(%arg0: i32) -> (i32, i32) {
    %c0_i32 = arith.constant 0 : i32
    %c0_i32_0 = arith.constant 0 : i32
    return %arg0, %c0_i32 : i32, i32
  }
  func.func @transform_1(%arg0: i32) -> (i32, i32) {
    %c0_i32 = arith.constant 0 : i32
    %c0_i32_0 = arith.constant 0 : i32
    %c0_i32_1 = arith.constant 0 : i32
    return %c0_i32, %c0_i32_0 : i32, i32
  }
  func.func @transform_2(%arg0: i32) -> (i32, i32) {
    %c0_i32 = arith.constant 0 : i32
    %c0_i32_0 = arith.constant 0 : i32
    %c0_i32_1 = arith.constant 0 : i32
    return %c0_i32, %c0_i32_0 : i32, i32
  }
  func.func @transform_3(%arg0: i32) -> (i32, i32) {
    %c0_i32 = arith.constant 0 : i32
    %c0_i32_0 = arith.constant 0 : i32
    return %arg0, %c0_i32 : i32, i32
  }
}

</mosaic_0001>

<llo_original>
// kernel: vit_forward.17
$region0: #{vit_forward.17}
  #allocation0 [shape = 'u32[]', space=smem, size = 0x4, offset = 0x4, fixed_abs, tag = 'smem constant byte address 0x4 - core index']
  #allocation1 [shape = 'u32[72,128]{1,0:T(1,128)}', space=vmem, size = 0x9000, scoped, tag = 'internal scratch']
  %s0 = inlined_call_operand.vmem [shape: f32[34,32], index: 0, kind: input, shape index: {}]
  %s1 = inlined_call_operand.vmem [shape: f32[1,32], index: 1, kind: input, shape index: {}]
  %s2 = inlined_call_operand.vmem [shape: f32[1,32], index: 2, kind: input, shape index: {}]
  %s3 = inlined_call_operand.vmem [shape: f32[34,32], index: 3, kind: output, shape index: {}]
  %s4 = sld [smem:[#allocation0]]
  $region22: #{vit_forward.17} parent=0
    _
  %s6 = ssub.s32 1, %s4
  %s7 = scalar_select 0, %s6, %s4
  // Predicated region
  $region2: #{vit_forward.17} parent=0 // pred_check
    _
  $region3: #{vit_forward.17} parent=0 // pred_check_branch
    %9 = sbr.rel (0) target = $region5
  $region4: #{vit_forward.17} parent=0 // pred_region
    _
  $region5: #{vit_forward.17} parent=0 // pred_fallthru
    _
  // Predicated region
  $region6: #{vit_forward.17} parent=0 // pred_check
    _
  $region7: #{vit_forward.17} parent=0 // pred_check_branch
    %11 = sbr.rel (0) target = $region9
  $region8: #{vit_forward.17} parent=0 // pred_region
    _
  $region9: #{vit_forward.17} parent=0 // pred_fallthru
    _
  // Predicated region
  $region10: #{vit_forward.17} parent=0 // pred_check
    _
  $region11: #{vit_forward.17} parent=0 // pred_check_branch
    %13 = sbr.rel (0) target = $region13
  $region12: #{vit_forward.17} parent=0 // pred_region
    _
  $region13: #{vit_forward.17} parent=0 // pred_fallthru
    _
  %v14 = vld [vmem:[%s0] sm:$0xff]
  %v15 = vld [vmem:[%s0 + $0x8] sm:$0xff]
  %v16 = vld [vmem:[%s0 + $0x10] sm:$0xff]
  %v17 = vld [vmem:[%s0 + $0x18] sm:$0xff]
  %v18 = vld [vmem:[%s0 + $0x20] sm:$0xff]
  %vm19 = vcmask 261120
  %v20 = vsel %vm19, %v14, 0.0
  %21 = vadd.xlane.f32.xlu0 %v20
  %v22 = vpop.xlane.xlu0 %21
  %v23 = vsel %vm19, %v15, 0.0
  %24 = vadd.xlane.f32.xlu0 %v23
  %v25 = vpop.xlane.xlu0 %24
  %v26 = vsel %vm19, %v16, 0.0
  %27 = vadd.xlane.f32.xlu0 %v26
  %v28 = vpop.xlane.xlu0 %27
  %v29 = vsel %vm19, %v17, 0.0
  %30 = vadd.xlane.f32.xlu0 %v29
  %v31 = vpop.xlane.xlu0 %30
  %v32 = vsel %vm19, %v18, 0.0
  %33 = vadd.xlane.f32.xlu0 %v32
  %v34 = vpop.xlane.xlu0 %33
  %v35 = vrcp.pop 32.0
  %v36 = vmul.f32 32.0, %v35
  %v37 = vsub.f32 1.0, %v36
  %v38 = vmul.f32 %v35, %v37
  %v39 = vadd.f32 %v35, %v38
  %vm40 = vweird.f32 %v35
  %v41 = vsel %vm40, %v35, %v39
  %v42 = vmul.f32 %v22, %v41
  %v43 = vmul.f32 %v25, %v41
  %v44 = vmul.f32 %v28, %v41
  %v45 = vmul.f32 %v31, %v41
  %v46 = vmul.f32 %v34, %v41
  %v47 = vsub.f32 %v14, %v42
  %v48 = vsub.f32 %v15, %v43
  %v49 = vsub.f32 %v16, %v44
  %v50 = vsub.f32 %v17, %v45
  %v51 = vsub.f32 %v18, %v46
  %v52 = vmul.f32 %v47, %v47
  %v53 = vmul.f32 %v48, %v48
  %v54 = vmul.f32 %v49, %v49
  %v55 = vmul.f32 %v50, %v50
  %v56 = vmul.f32 %v51, %v51
  %v57 = vsel %vm19, %v52, 0.0
  %58 = vadd.xlane.f32.xlu0 %v57
  %v59 = vpop.xlane.xlu0 %58
  %v60 = vsel %vm19, %v53, 0.0
  %61 = vadd.xlane.f32.xlu0 %v60
  %v62 = vpop.xlane.xlu0 %61
  %v63 = vsel %vm19, %v54, 0.0
  %64 = vadd.xlane.f32.xlu0 %v63
  %v65 = vpop.xlane.xlu0 %64
  %v66 = vsel %vm19, %v55, 0.0
  %67 = vadd.xlane.f32.xlu0 %v66
  %v68 = vpop.xlane.xlu0 %67
  %v69 = vsel %vm19, %v56, 0.0
  %70 = vadd.xlane.f32.xlu0 %v69
  %v71 = vpop.xlane.xlu0 %70
  %v72 = vmul.f32 %v59, %v41
  %v73 = vmul.f32 %v62, %v41
  %v74 = vmul.f32 %v65, %v41
  %v75 = vmul.f32 %v68, %v41
  %v76 = vmul.f32 %v71, %v41
  %v77 = vadd.f32 %v72, 1e-06
  %v78 = vadd.f32 %v73, 1e-06
  %v79 = vadd.f32 %v74, 1e-06
  %v80 = vadd.f32 %v75, 1e-06
  %v81 = vadd.f32 %v76, 1e-06
  %v82 = vrsqrt.pop %v77
  %v83 = vmul.f32 %v82, %v77
  %v84 = vmul.f32 %v83, %v82
  %v85 = vmul.f32 0.5, %v84
  %v86 = vsub.f32 1.5, %v85
  %v87 = vmul.f32 %v82, %v86
  %vm88 = vweird.f32 %v77
  %vm89 = vweird.f32 %v82
  %vm90 = vmor %vm88, %vm89
  %v91 = vsel %vm90, %v82, %v87
  %v92 = vrsqrt.pop %v78
  %v93 = vmul.f32 %v92, %v78
  %v94 = vmul.f32 %v93, %v92
  %v95 = vmul.f32 0.5, %v94
  %v96 = vsub.f32 1.5, %v95
  %v97 = vmul.f32 %v92, %v96
  %vm98 = vweird.f32 %v78
  %vm99 = vweird.f32 %v92
  %vm100 = vmor %vm98, %vm99
  %v101 = vsel %vm100, %v92, %v97
  %v102 = vrsqrt.pop %v79
  %v103 = vmul.f32 %v102, %v79
  %v104 = vmul.f32 %v103, %v102
  %v105 = vmul.f32 0.5, %v104
  %v106 = vsub.f32 1.5, %v105
  %v107 = vmul.f32 %v102, %v106
  %vm108 = vweird.f32 %v79
  %vm109 = vweird.f32 %v102
  %vm110 = vmor %vm108, %vm109
  %v111 = vsel %vm110, %v102, %v107
  %v112 = vrsqrt.pop %v80
  %v113 = vmul.f32 %v112, %v80
  %v114 = vmul.f32 %v113, %v112
  %v115 = vmul.f32 0.5, %v114
  %v116 = vsub.f32 1.5, %v115
  %v117 = vmul.f32 %v112, %v116
  %vm118 = vweird.f32 %v80
  %vm119 = vweird.f32 %v112
  %vm120 = vmor %vm118, %vm119
  %v121 = vsel %vm120, %v112, %v117
  %v122 = vrsqrt.pop %v81
  %v123 = vmul.f32 %v122, %v81
  %v124 = vmul.f32 %v123, %v122
  %v125 = vmul.f32 0.5, %v124
  %v126 = vsub.f32 1.5, %v125
  %v127 = vmul.f32 %v122, %v126
  %vm128 = vweird.f32 %v81
  %vm129 = vweird.f32 %v122
  %vm130 = vmor %vm128, %vm129
  %v131 = vsel %vm130, %v122, %v127
  %v132 = vmul.f32 %v47, %v91
  %v133 = vmul.f32 %v48, %v101
  %v134 = vmul.f32 %v49, %v111
  %v135 = vmul.f32 %v50, %v121
  %v136 = vmul.f32 %v51, %v131
  %v137 = vld [vmem:[%s1] sm:$0x1]
  %v139 = vperm.slane %v137, 0
  %v141 = vmul.f32 %v132, %v139
  %v142 = vmul.f32 %v133, %v139
  %v143 = vmul.f32 %v134, %v139
  %v144 = vmul.f32 %v135, %v139
  %v145 = vmul.f32 %v136, %v139
  %v146 = vld [vmem:[%s2] sm:$0x1]
  %v148 = vperm.slane %v146, 0
  %v150 = vadd.f32 %v141, %v148
  %v151 = vadd.f32 %v142, %v148
  %v152 = vadd.f32 %v143, %v148
  %v153 = vadd.f32 %v144, %v148
  %v154 = vadd.f32 %v145, %v148
  %155 = vst.msk [vmem:[%s3] sm:$0xff] %vm19, %v150
  %156 = vst.msk [vmem:[%s3 + $0x8] sm:$0xff] %vm19, %v151
  %157 = vst.msk [vmem:[%s3 + $0x10] sm:$0xff] %vm19, %v152
  %158 = vst.msk [vmem:[%s3 + $0x18] sm:$0xff] %vm19, %v153
  %159 = vst.msk [vmem:[%s3 + $0x20] sm:$0xff] %vm19, %v154
  // Predicated region
  $region14: #{vit_forward.17} parent=0 // pred_check
    _
  $region15: #{vit_forward.17} parent=0 // pred_check_branch
    %161 = sbr.rel (0) target = $region17
  $region16: #{vit_forward.17} parent=0 // pred_region
    _
  $region17: #{vit_forward.17} parent=0 // pred_fallthru
    _
  // Predicated region
  $region18: #{vit_forward.17} parent=0 // pred_check
    _
  $region19: #{vit_forward.17} parent=0 // pred_check_branch
    %163 = sbr.rel (0) target = $region21
  $region20: #{vit_forward.17} parent=0 // pred_region
    _
  $region21: #{vit_forward.17} parent=0 // pred_fallthru
    _

// kernel: vit_forward.16
$region0: #{vit_forward.16}
  #allocation0 [shape = 'u32[]', space=smem, size = 0x4, offset = 0x4, fixed_abs, tag = 'smem constant byte address 0x4 - core index']
  #allocation1 [shape = 'u32[72,128]{1,0:T(1,128)}', space=vmem, size = 0x9000, scoped, tag = 'internal scratch']
  %s0 = inlined_call_operand.vmem [shape: bf16[32,64], index: 0, kind: input, shape index: {}]
  %s1 = inlined_call_operand.vmem [shape: bf16[64,128], index: 1, kind: input, shape index: {}]
  %s2 = inlined_call_operand.vmem [shape: f32[1,128], index: 2, kind: input, shape index: {}]
  %s3 = inlined_call_operand.vmem [shape: f32[32,128], index: 3, kind: output, shape index: {}]
  %s4 = sld [smem:[#allocation0]]
  $region22: #{vit_forward.16} parent=0
    _
  %s6 = ssub.s32 1, %s4
  %s7 = scalar_select 0, %s6, %s4
  // Predicated region
  $region2: #{vit_forward.16} parent=0 // pred_check
    _
  $region3: #{vit_forward.16} parent=0 // pred_check_branch
    %9 = sbr.rel (0) target = $region5
  $region4: #{vit_forward.16} parent=0 // pred_region
    _
  $region5: #{vit_forward.16} parent=0 // pred_fallthru
    _
  // Predicated region
  $region6: #{vit_forward.16} parent=0 // pred_check
    _
  $region7: #{vit_forward.16} parent=0 // pred_check_branch
    %11 = sbr.rel (0) target = $region9
  $region8: #{vit_forward.16} parent=0 // pred_region
    _
  $region9: #{vit_forward.16} parent=0 // pred_fallthru
    _
  // Predicated region
  $region10: #{vit_forward.16} parent=0 // pred_check
    _
  $region11: #{vit_forward.16} parent=0 // pred_check_branch
    %13 = sbr.rel (0) target = $region13
  $region12: #{vit_forward.16} parent=0 // pred_region
    _
  $region13: #{vit_forward.16} parent=0 // pred_fallthru
    _
  %v15 = vld [vmem:[%s0] sm:$0xf]
  %v16 = vld [vmem:[%s0 + $0x4] sm:$0xf]
  %v17 = vld [vmem:[%s0 + $0x8] sm:$0xf]
  %v18 = vld [vmem:[%s0 + $0xc] sm:$0xf]
  %v19 = vld [vmem:[%s1] sm:$0xf]
  %v20 = vld [vmem:[%s1 + $0x4] sm:$0xf]
  %v21 = vld [vmem:[%s1 + $0x8] sm:$0xf]
  %v22 = vld [vmem:[%s1 + $0xc] sm:$0xf]
  %v23 = vld [vmem:[%s1 + $0x10] sm:$0xf]
  %v24 = vld [vmem:[%s1 + $0x14] sm:$0xf]
  %v25 = vld [vmem:[%s1 + $0x18] sm:$0xf]
  %v26 = vld [vmem:[%s1 + $0x1c] sm:$0xf]
  %v27 = vld [vmem:[%s2] sm:$0x1]
  %v29 = vperm.slane %v27, 0
  %v35 = vunpack.c.l.b16 %v15
  %v36 = vunpack.c.l.b16 %v16
  %v37 = vunpack.c.l.b16 %v17
  %v38 = vunpack.c.l.b16 %v18
  %v39 = vpack.c.b16 %v36, %v35
  %v40 = vpack.c.b16 %v38, %v37
  %v49 = vunpack.c.l.b16 %v19
  %v50 = vunpack.c.l.b16 %v20
  %v51 = vunpack.c.l.b16 %v21
  %v52 = vunpack.c.l.b16 %v22
  %v53 = vunpack.c.l.b16 %v23
  %v54 = vunpack.c.l.b16 %v24
  %v55 = vunpack.c.l.b16 %v25
  %v56 = vunpack.c.l.b16 %v26
  %v57 = vpack.c.b16 %v50, %v49
  %v58 = vpack.c.b16 %v52, %v51
  %v59 = vpack.c.b16 %v54, %v53
  %v60 = vpack.c.b16 %v56, %v55
  %vm65 = vcmask 523264
  %v67 = vsel %vm65, %v39, 0
  %v70 = vsel %vm65, %v40, 0
  %72 = vmatpush.bf16.msra.mxu0 0
  %73 = vmatpush.bf16.msra.mxu0 0
  %74 = vmatpush.bf16.msra.mxu0 0
  %75 = vmatpush.bf16.msra.mxu0 0
  %76 = vmatpush.bf16.msra.mxu0 %v60
  %77 = vmatpush.bf16.msra.mxu0 %v59
  %78 = vmatpush.bf16.msra.mxu0 %v58
  %79 = vmatpush.bf16.msra.mxu0 %v57
  %80 = vmatmul.bf16.gmra.mxu0 %v67
  %v81 = vpop.f32.mrf.mxu0
  %v82 = vadd.f32 %v29, %v81
  %v83 = vpop.f32.mrf.mxu0
  %v84 = vadd.f32 %v29, %v83
  %85 = vmatmul.bf16.gmra.mxu0 %v70
  %v86 = vpop.f32.mrf.mxu0
  %v87 = vadd.f32 %v29, %v86
  %v88 = vpop.f32.mrf.mxu0
  %v89 = vadd.f32 %v29, %v88
  %90 = vdwg.mxu0
  %91 = vst [vmem:[%s3] sm:$0xff] %v82
  %92 = vst [vmem:[%s3 + $0x8] sm:$0xff] %v84
  %93 = vst [vmem:[%s3 + $0x10] sm:$0xff] %v87
  %94 = vst [vmem:[%s3 + $0x18] sm:$0xff] %v89
  // Predicated region
  $region14: #{vit_forward.16} parent=0 // pred_check
    _
  $region15: #{vit_forward.16} parent=0 // pred_check_branch
    %96 = sbr.rel (0) target = $region17
  $region16: #{vit_forward.16} parent=0 // pred_region
    _
  $region17: #{vit_forward.16} parent=0 // pred_fallthru
    _
  // Predicated region
  $region18: #{vit_forward.16} parent=0 // pred_check
    _
  $region19: #{vit_forward.16} parent=0 // pred_check_branch
    %98 = sbr.rel (0) target = $region21
  $region20: #{vit_forward.16} parent=0 // pred_region
    _
  $region21: #{vit_forward.16} parent=0 // pred_fallthru
    _

// kernel: vit_forward.18
$region0: #{vit_forward.18}
  #allocation0 [shape = 'u32[]', space=smem, size = 0x4, offset = 0x4, fixed_abs, tag = 'smem constant byte address 0x4 - core index']
  #allocation1 [shape = 'u32[72,128]{1,0:T(1,128)}', space=vmem, size = 0x9000, scoped, tag = 'internal scratch']
  %s0 = inlined_call_operand.vmem [shape: bf16[34,32], index: 0, kind: input, shape index: {}]
  %s1 = inlined_call_operand.vmem [shape: bf16[32,128], index: 1, kind: input, shape index: {}]
  %s2 = inlined_call_operand.vmem [shape: f32[1,128], index: 2, kind: input, shape index: {}]
  %s3 = inlined_call_operand.vmem [shape: f32[34,128], index: 3, kind: output, shape index: {}]
  %s4 = sld [smem:[#allocation0]]
  $region22: #{vit_forward.18} parent=0
    _
  %s6 = ssub.s32 1, %s4
  %s7 = scalar_select 0, %s6, %s4
  // Predicated region
  $region2: #{vit_forward.18} parent=0 // pred_check
    _
  $region3: #{vit_forward.18} parent=0 // pred_check_branch
    %9 = sbr.rel (0) target = $region5
  $region4: #{vit_forward.18} parent=0 // pred_region
    _
  $region5: #{vit_forward.18} parent=0 // pred_fallthru
    _
  // Predicated region
  $region6: #{vit_forward.18} parent=0 // pred_check
    _
  $region7: #{vit_forward.18} parent=0 // pred_check_branch
    %11 = sbr.rel (0) target = $region9
  $region8: #{vit_forward.18} parent=0 // pred_region
    _
  $region9: #{vit_forward.18} parent=0 // pred_fallthru
    _
  // Predicated region
  $region10: #{vit_forward.18} parent=0 // pred_check
    _
  $region11: #{vit_forward.18} parent=0 // pred_check_branch
    %13 = sbr.rel (0) target = $region13
  $region12: #{vit_forward.18} parent=0 // pred_region
    _
  $region13: #{vit_forward.18} parent=0 // pred_fallthru
    _
  %v15 = vld [vmem:[%s0] sm:$0xf]
  %v16 = vld [vmem:[%s0 + $0x4] sm:$0xf]
  %v17 = vld [vmem:[%s0 + $0x8] sm:$0xf]
  %v18 = vld [vmem:[%s0 + $0xc] sm:$0xf]
  %v19 = vld [vmem:[%s0 + $0x10] sm:$0xf]
  %v20 = vld [vmem:[%s1] sm:$0xf]
  %v21 = vld [vmem:[%s1 + $0x4] sm:$0xf]
  %v22 = vld [vmem:[%s1 + $0x8] sm:$0xf]
  %v23 = vld [vmem:[%s1 + $0xc] sm:$0xf]
  %v24 = vld [vmem:[%s2] sm:$0x1]
  %v26 = vperm.slane %v24, 0
  %v33 = vunpack.c.l.b16 %v15
  %v34 = vunpack.c.l.b16 %v16
  %v35 = vunpack.c.l.b16 %v17
  %v36 = vunpack.c.l.b16 %v18
  %v37 = vunpack.c.l.b16 %v19
  %v38 = vpack.c.b16 %v34, %v33
  %v39 = vpack.c.b16 %v36, %v35
  %v40 = vpack.c.b16 %v37, %v37
  %v45 = vunpack.c.l.b16 %v20
  %v46 = vunpack.c.l.b16 %v21
  %v47 = vunpack.c.l.b16 %v22
  %v48 = vunpack.c.l.b16 %v23
  %v49 = vpack.c.b16 %v46, %v45
  %v50 = vpack.c.b16 %v48, %v47
  %vm53 = vcmask 261120
  %v55 = vsel %vm53, %v38, 0
  %v58 = vsel %vm53, %v39, 0
  %v61 = vsel %vm53, %v40, 0
  %63 = vmatpush.bf16.msra.mxu0 0
  %64 = vmatpush.bf16.msra.mxu0 0
  %65 = vmatpush.bf16.msra.mxu0 0
  %66 = vmatpush.bf16.msra.mxu0 0
  %67 = vmatpush.bf16.msra.mxu0 0
  %68 = vmatpush.bf16.msra.mxu0 0
  %69 = vmatpush.bf16.msra.mxu0 %v50
  %70 = vmatpush.bf16.msra.mxu0 %v49
  %71 = vmatmul.bf16.gmra.mxu0 %v55
  %v72 = vpop.f32.mrf.mxu0
  %v73 = vadd.f32 %v26, %v72
  %v74 = vpop.f32.mrf.mxu0
  %v75 = vadd.f32 %v26, %v74
  %76 = vmatmul.bf16.gmra.mxu0 %v58
  %v77 = vpop.f32.mrf.mxu0
  %v78 = vadd.f32 %v26, %v77
  %v79 = vpop.f32.mrf.mxu0
  %v80 = vadd.f32 %v26, %v79
  %81 = vmatmul.bf16.gmra.mxu0 %v61
  %v82 = vpop.f32.mrf.mxu0
  %v83 = vadd.f32 %v26, %v82
  %v84 = vpop.f32.mrf.mxu0
  %85 = vdwg.mxu0
  %86 = vst [vmem:[%s3] sm:$0xff] %v73
  %87 = vst [vmem:[%s3 + $0x8] sm:$0xff] %v75
  %88 = vst [vmem:[%s3 + $0x10] sm:$0xff] %v78
  %89 = vst [vmem:[%s3 + $0x18] sm:$0xff] %v80
  %90 = vst [vmem:[%s3 + $0x20] sm:$0xff] %v83
  // Predicated region
  $region14: #{vit_forward.18} parent=0 // pred_check
    _
  $region15: #{vit_forward.18} parent=0 // pred_check_branch
    %92 = sbr.rel (0) target = $region17
  $region16: #{vit_forward.18} parent=0 // pred_region
    _
  $region17: #{vit_forward.18} parent=0 // pred_fallthru
    _
  // Predicated region
  $region18: #{vit_forward.18} parent=0 // pred_check
    _
  $region19: #{vit_forward.18} parent=0 // pred_check_branch
    %94 = sbr.rel (0) target = $region21
  $region20: #{vit_forward.18} parent=0 // pred_region
    _
  $region21: #{vit_forward.18} parent=0 // pred_fallthru
    _

// kernel: vit_forward.20
$region0: #{vit_forward.20}
  #allocation0 [shape = 'u32[]', space=smem, size = 0x4, offset = 0x4, fixed_abs, tag = 'smem constant byte address 0x4 - core index']
  #allocation1 [shape = 'u32[72,128]{1,0:T(1,128)}', space=vmem, size = 0x9000, scoped, tag = 'internal scratch']
  %s0 = inlined_call_operand.vmem [shape: bf16[34,32], index: 0, kind: input, shape index: {}]
  %s1 = inlined_call_operand.vmem [shape: bf16[32,128], index: 1, kind: input, shape index: {}]
  %s2 = inlined_call_operand.vmem [shape: f32[1,128], index: 2, kind: input, shape index: {}]
  %s3 = inlined_call_operand.vmem [shape: f32[34,128], index: 3, kind: output, shape index: {}]
  %s4 = sld [smem:[#allocation0]]
  $region22: #{vit_forward.20} parent=0
    _
  %s6 = ssub.s32 1, %s4
  %s7 = scalar_select 0, %s6, %s4
  // Predicated region
  $region2: #{vit_forward.20} parent=0 // pred_check
    _
  $region3: #{vit_forward.20} parent=0 // pred_check_branch
    %9 = sbr.rel (0) target = $region5
  $region4: #{vit_forward.20} parent=0 // pred_region
    _
  $region5: #{vit_forward.20} parent=0 // pred_fallthru
    _
  // Predicated region
  $region6: #{vit_forward.20} parent=0 // pred_check
    _
  $region7: #{vit_forward.20} parent=0 // pred_check_branch
    %11 = sbr.rel (0) target = $region9
  $region8: #{vit_forward.20} parent=0 // pred_region
    _
  $region9: #{vit_forward.20} parent=0 // pred_fallthru
    _
  // Predicated region
  $region10: #{vit_forward.20} parent=0 // pred_check
    _
  $region11: #{vit_forward.20} parent=0 // pred_check_branch
    %13 = sbr.rel (0) target = $region13
  $region12: #{vit_forward.20} parent=0 // pred_region
    _
  $region13: #{vit_forward.20} parent=0 // pred_fallthru
    _
  %v15 = vld [vmem:[%s0] sm:$0xf]
  %v16 = vld [vmem:[%s0 + $0x4] sm:$0xf]
  %v17 = vld [vmem:[%s0 + $0x8] sm:$0xf]
  %v18 = vld [vmem:[%s0 + $0xc] sm:$0xf]
  %v19 = vld [vmem:[%s0 + $0x10] sm:$0xf]
  %v20 = vld [vmem:[%s1] sm:$0xf]
  %v21 = vld [vmem:[%s1 + $0x4] sm:$0xf]
  %v22 = vld [vmem:[%s1 + $0x8] sm:$0xf]
  %v23 = vld [vmem:[%s1 + $0xc] sm:$0xf]
  %v24 = vld [vmem:[%s2] sm:$0x1]
  %v26 = vperm.slane %v24, 0
  %v33 = vunpack.c.l.b16 %v15
  %v34 = vunpack.c.l.b16 %v16
  %v35 = vunpack.c.l.b16 %v17
  %v36 = vunpack.c.l.b16 %v18
  %v37 = vunpack.c.l.b16 %v19
  %v38 = vpack.c.b16 %v34, %v33
  %v39 = vpack.c.b16 %v36, %v35
  %v40 = vpack.c.b16 %v37, %v37
  %v45 = vunpack.c.l.b16 %v20
  %v46 = vunpack.c.l.b16 %v21
  %v47 = vunpack.c.l.b16 %v22
  %v48 = vunpack.c.l.b16 %v23
  %v49 = vpack.c.b16 %v46, %v45
  %v50 = vpack.c.b16 %v48, %v47
  %vm53 = vcmask 261120
  %v55 = vsel %vm53, %v38, 0
  %v58 = vsel %vm53, %v39, 0
  %v61 = vsel %vm53, %v40, 0
  %63 = vmatpush.bf16.msra.mxu0 0
  %64 = vmatpush.bf16.msra.mxu0 0
  %65 = vmatpush.bf16.msra.mxu0 0
  %66 = vmatpush.bf16.msra.mxu0 0
  %67 = vmatpush.bf16.msra.mxu0 0
  %68 = vmatpush.bf16.msra.mxu0 0
  %69 = vmatpush.bf16.msra.mxu0 %v50
  %70 = vmatpush.bf16.msra.mxu0 %v49
  %71 = vmatmul.bf16.gmra.mxu0 %v55
  %v72 = vpop.f32.mrf.mxu0
  %v73 = vadd.f32 %v26, %v72
  %v74 = vpop.f32.mrf.mxu0
  %v75 = vadd.f32 %v26, %v74
  %76 = vmatmul.bf16.gmra.mxu0 %v58
  %v77 = vpop.f32.mrf.mxu0
  %v78 = vadd.f32 %v26, %v77
  %v79 = vpop.f32.mrf.mxu0
  %v80 = vadd.f32 %v26, %v79
  %81 = vmatmul.bf16.gmra.mxu0 %v61
  %v82 = vpop.f32.mrf.mxu0
  %v83 = vadd.f32 %v26, %v82
  %v84 = vpop.f32.mrf.mxu0
  %85 = vdwg.mxu0
  %86 = vst [vmem:[%s3] sm:$0xff] %v73
  %87 = vst [vmem:[%s3 + $0x8] sm:$0xff] %v75
  %88 = vst [vmem:[%s3 + $0x10] sm:$0xff] %v78
  %89 = vst [vmem:[%s3 + $0x18] sm:$0xff] %v80
  %90 = vst [vmem:[%s3 + $0x20] sm:$0xff] %v83
  // Predicated region
  $region14: #{vit_forward.20} parent=0 // pred_check
    _
  $region15: #{vit_forward.20} parent=0 // pred_check_branch
    %92 = sbr.rel (0) target = $region17
  $region16: #{vit_forward.20} parent=0 // pred_region
    _
  $region17: #{vit_forward.20} parent=0 // pred_fallthru
    _
  // Predicated region
  $region18: #{vit_forward.20} parent=0 // pred_check
    _
  $region19: #{vit_forward.20} parent=0 // pred_check_branch
    %94 = sbr.rel (0) target = $region21
  $region20: #{vit_forward.20} parent=0 // pred_region
    _
  $region21: #{vit_forward.20} parent=0 // pred_fallthru
    _

// kernel: vit_forward.22
$region0: #{vit_forward.22}
  #allocation0 [shape = 'u32[]', space=smem, size = 0x4, offset = 0x4, fixed_abs, tag = 'smem constant byte address 0x4 - core index']
  #allocation1 [shape = 'u32[72,128]{1,0:T(1,128)}', space=vmem, size = 0x9000, scoped, tag = 'internal scratch']
  %s0 = inlined_call_operand.vmem [shape: bf16[34,32], index: 0, kind: input, shape index: {}]
  %s1 = inlined_call_operand.vmem [shape: bf16[32,128], index: 1, kind: input, shape index: {}]
  %s2 = inlined_call_operand.vmem [shape: f32[1,128], index: 2, kind: input, shape index: {}]
  %s3 = inlined_call_operand.vmem [shape: f32[34,128], index: 3, kind: output, shape index: {}]
  %s4 = sld [smem:[#allocation0]]
  $region22: #{vit_forward.22} parent=0
    _
  %s6 = ssub.s32 1, %s4
  %s7 = scalar_select 0, %s6, %s4
  // Predicated region
  $region2: #{vit_forward.22} parent=0 // pred_check
    _
  $region3: #{vit_forward.22} parent=0 // pred_check_branch
    %9 = sbr.rel (0) target = $region5
  $region4: #{vit_forward.22} parent=0 // pred_region
    _
  $region5: #{vit_forward.22} parent=0 // pred_fallthru
    _
  // Predicated region
  $region6: #{vit_forward.22} parent=0 // pred_check
    _
  $region7: #{vit_forward.22} parent=0 // pred_check_branch
    %11 = sbr.rel (0) target = $region9
  $region8: #{vit_forward.22} parent=0 // pred_region
    _
  $region9: #{vit_forward.22} parent=0 // pred_fallthru
    _
  // Predicated region
  $region10: #{vit_forward.22} parent=0 // pred_check
    _
  $region11: #{vit_forward.22} parent=0 // pred_check_branch
    %13 = sbr.rel (0) target = $region13
  $region12: #{vit_forward.22} parent=0 // pred_region
    _
  $region13: #{vit_forward.22} parent=0 // pred_fallthru
    _
  %v15 = vld [vmem:[%s0] sm:$0xf]
  %v16 = vld [vmem:[%s0 + $0x4] sm:$0xf]
  %v17 = vld [vmem:[%s0 + $0x8] sm:$0xf]
  %v18 = vld [vmem:[%s0 + $0xc] sm:$0xf]
  %v19 = vld [vmem:[%s0 + $0x10] sm:$0xf]
  %v20 = vld [vmem:[%s1] sm:$0xf]
  %v21 = vld [vmem:[%s1 + $0x4] sm:$0xf]
  %v22 = vld [vmem:[%s1 + $0x8] sm:$0xf]
  %v23 = vld [vmem:[%s1 + $0xc] sm:$0xf]
  %v24 = vld [vmem:[%s2] sm:$0x1]
  %v26 = vperm.slane %v24, 0
  %v33 = vunpack.c.l.b16 %v15
  %v34 = vunpack.c.l.b16 %v16
  %v35 = vunpack.c.l.b16 %v17
  %v36 = vunpack.c.l.b16 %v18
  %v37 = vunpack.c.l.b16 %v19
  %v38 = vpack.c.b16 %v34, %v33
  %v39 = vpack.c.b16 %v36, %v35
  %v40 = vpack.c.b16 %v37, %v37
  %v45 = vunpack.c.l.b16 %v20
  %v46 = vunpack.c.l.b16 %v21
  %v47 = vunpack.c.l.b16 %v22
  %v48 = vunpack.c.l.b16 %v23
  %v49 = vpack.c.b16 %v46, %v45
  %v50 = vpack.c.b16 %v48, %v47
  %vm53 = vcmask 261120
  %v55 = vsel %vm53, %v38, 0
  %v58 = vsel %vm53, %v39, 0
  %v61 = vsel %vm53, %v40, 0
  %63 = vmatpush.bf16.msra.mxu0 0
  %64 = vmatpush.bf16.msra.mxu0 0
  %65 = vmatpush.bf16.msra.mxu0 0
  %66 = vmatpush.bf16.msra.mxu0 0
  %67 = vmatpush.bf16.msra.mxu0 0
  %68 = vmatpush.bf16.msra.mxu0 0
  %69 = vmatpush.bf16.msra.mxu0 %v50
  %70 = vmatpush.bf16.msra.mxu0 %v49
  %71 = vmatmul.bf16.gmra.mxu0 %v55
  %v72 = vpop.f32.mrf.mxu0
  %v73 = vadd.f32 %v26, %v72
  %v74 = vpop.f32.mrf.mxu0
  %v75 = vadd.f32 %v26, %v74
  %76 = vmatmul.bf16.gmra.mxu0 %v58
  %v77 = vpop.f32.mrf.mxu0
  %v78 = vadd.f32 %v26, %v77
  %v79 = vpop.f32.mrf.mxu0
  %v80 = vadd.f32 %v26, %v79
  %81 = vmatmul.bf16.gmra.mxu0 %v61
  %v82 = vpop.f32.mrf.mxu0
  %v83 = vadd.f32 %v26, %v82
  %v84 = vpop.f32.mrf.mxu0
  %85 = vdwg.mxu0
  %v86 = vmul.f32 %v73, %v73
  %v87 = vmul.f32 %v75, %v75
  %v88 = vmul.f32 %v78, %v78
  %v89 = vmul.f32 %v80, %v80
  %v90 = vmul.f32 %v83, %v83
  %v91 = vmul.f32 %v73, %v86
  %v92 = vmul.f32 %v75, %v87
  %v93 = vmul.f32 %v78, %v88
  %v94 = vmul.f32 %v80, %v89
  %v95 = vmul.f32 %v83, %v90
  %v96 = vmul.f32 %v91, 0.044715
  %v97 = vmul.f32 %v92, 0.044715
  %v98 = vmul.f32 %v93, 0.044715
  %v99 = vmul.f32 %v94, 0.044715
  %v100 = vmul.f32 %v95, 0.044715
  %v101 = vadd.f32 %v73, %v96
  %v102 = vadd.f32 %v75, %v97
  %v103 = vadd.f32 %v78, %v98
  %v104 = vadd.f32 %v80, %v99
  %v105 = vadd.f32 %v83, %v100
  %v106 = vmul.f32 %v101, 0.7978846
  %v107 = vmul.f32 %v102, 0.7978846
  %v108 = vmul.f32 %v103, 0.7978846
  %v109 = vmul.f32 %v104, 0.7978846
  %v110 = vmul.f32 %v105, 0.7978846
  %v111 = vtanh.pop %v106
  %v112 = vtanh.pop %v107
  %v113 = vtanh.pop %v108
  %v114 = vtanh.pop %v109
  %v115 = vtanh.pop %v110
  %v116 = vadd.f32 %v111, 1.0
  %v117 = vadd.f32 %v112, 1.0
  %v118 = vadd.f32 %v113, 1.0
  %v119 = vadd.f32 %v114, 1.0
  %v120 = vadd.f32 %v115, 1.0
  %v121 = vmul.f32 %v116, 0.5
  %v122 = vmul.f32 %v117, 0.5
  %v123 = vmul.f32 %v118, 0.5
  %v124 = vmul.f32 %v119, 0.5
  %v125 = vmul.f32 %v120, 0.5
  %v126 = vmul.f32 %v73, %v121
  %v127 = vmul.f32 %v75, %v122
  %v128 = vmul.f32 %v78, %v123
  %v129 = vmul.f32 %v80, %v124
  %v130 = vmul.f32 %v83, %v125
  %131 = vst [vmem:[%s3] sm:$0xff] %v126
  %132 = vst [vmem:[%s3 + $0x8] sm:$0xff] %v127
  %133 = vst [vmem:[%s3 + $0x10] sm:$0xff] %v128
  %134 = vst [vmem:[%s3 + $0x18] sm:$0xff] %v129
  %135 = vst [vmem:[%s3 + $0x20] sm:$0xff] %v130
  // Predicated region
  $region14: #{vit_forward.22} parent=0 // pred_check
    _
  $region15: #{vit_forward.22} parent=0 // pred_check_branch
    %137 = sbr.rel (0) target = $region17
  $region16: #{vit_forward.22} parent=0 // pred_region
    _
  $region17: #{vit_forward.22} parent=0 // pred_fallthru
    _
  // Predicated region
  $region18: #{vit_forward.22} parent=0 // pred_check
    _
  $region19: #{vit_forward.22} parent=0 // pred_check_branch
    %139 = sbr.rel (0) target = $region21
  $region20: #{vit_forward.22} parent=0 // pred_region
    _
  $region21: #{vit_forward.22} parent=0 // pred_fallthru
    _

// kernel: vit_forward.19
$region0: #{vit_forward.19}
  #allocation0 [shape = 'u32[]', space=smem, size = 0x4, offset = 0x4, fixed_abs, tag = 'smem constant byte address 0x4 - core index']
  #allocation1 [shape = 'u32[72,128]{1,0:T(1,128)}', space=vmem, size = 0x9000, scoped, tag = 'internal scratch']
  %s0 = inlined_call_operand.vmem [shape: bf16[2,4,17,8], index: 0, kind: input, shape index: {}]
  %s1 = inlined_call_operand.vmem [shape: bf16[2,4,17,8], index: 1, kind: input, shape index: {}]
  %s2 = inlined_call_operand.vmem [shape: bf16[2,4,17,8], index: 2, kind: input, shape index: {}]
  %s3 = inlined_call_operand.vmem [shape: f32[2,4,17,8], index: 3, kind: output, shape index: {}]
  %s4 = sld [smem:[#allocation0]]
  $region45: #{vit_forward.19} parent=0
    _
  %s6 = ssub.s32 1, %s4
  %s7 = scalar_select 0, %s6, %s4
  loop: start=0, step=1, limit=4
  $region2: #{vit_forward.19} parent=0 // loop_pre_header
    _
  $region3: #{vit_forward.19} parent=0 // loop_header
    %s9 = sphi 0, %s13
    %p10 = scmp.ge.s32.totalorder %s9, 4
    %s19 = sphi 0, %s21
    %s22 = sphi 0, %s19
    %s23 = sphi 0, %s22
    %s39 = sphi 0, %s23
    %s45 = sphi 0, %s47
    %s48 = sphi 0, %s45
    %s49 = sphi 0, %s48
    %s65 = sphi 0, %s49
    %s71 = sphi 0, %s73
    %s74 = sphi 0, %s71
    %s75 = sphi 0, %s74
    %s91 = sphi 0, %s75
    %s97 = sphi 0, %s99
    %s100 = sphi 0, %s97
    %s101 = sphi 0, %s100
    %s117 = sphi 0, %s101
  $region4: #{vit_forward.19} parent=0 // loop_header_branch
    %12 = sbr.rel (%p10) target = $region8
  $region5: #{vit_forward.19} parent=0 // loop_body
    %s14 = ssub.s32 %s9, 1
    %s15 = ssub.s32 %s9, 2
    %s16 = sadd.s32 %s9, 1
    %s17 = ssub.s32 %s9, %s16
    %p18 = scmp.eq.s32.totalorder %s17, 0
    %s20 = sadd.s32 %s19, 1
    %s21 = scalar_select %p18, %s19, %s20
    %p24 = pneg %p18
    %p25 = scmp.eq.s32.totalorder %s9, 1
    %p26 = por %p24, %p25
    %p27 = scmp.ne.s32.totalorder %s19, %s22
    %p28 = scmp.eq.s32.totalorder %s9, 0
    %p29 = por %p27, %p28
    %p30 = scmp.ne.s32.totalorder %s19, %s22
    %p31 = scmp.eq.s32.totalorder %s14, 1
    %p32 = por %p30, %p31
    %p33 = scmp.ne.s32.totalorder %s22, %s23
    %p34 = scmp.eq.s32.totalorder %s14, 0
    %p35 = por %p33, %p34
    %p36 = scmp.ne.s32.totalorder %s22, %s23
    %p37 = scmp.eq.s32.totalorder %s15, 1
    %p38 = por %p36, %p37
    %p40 = scmp.ne.s32.totalorder %s23, %s39
    %p41 = scmp.eq.s32.totalorder %s15, 0
    %p42 = por %p40, %p41
    %s43 = ssub.s32 %s9, %s16
    %p44 = scmp.eq.s32.totalorder %s43, 0
    %s46 = sadd.s32 %s45, 1
    %s47 = scalar_select %p44, %s45, %s46
    %p50 = pneg %p44
    %p51 = scmp.eq.s32.totalorder %s9, 1
    %p52 = por %p50, %p51
    %p53 = scmp.ne.s32.totalorder %s45, %s48
    %p54 = scmp.eq.s32.totalorder %s9, 0
    %p55 = por %p53, %p54
    %p56 = scmp.ne.s32.totalorder %s45, %s48
    %p57 = scmp.eq.s32.totalorder %s14, 1
    %p58 = por %p56, %p57
    %p59 = scmp.ne.s32.totalorder %s48, %s49
    %p60 = scmp.eq.s32.totalorder %s14, 0
    %p61 = por %p59, %p60
    %p62 = scmp.ne.s32.totalorder %s48, %s49
    %p63 = scmp.eq.s32.totalorder %s15, 1
    %p64 = por %p62, %p63
    %p66 = scmp.ne.s32.totalorder %s49, %s65
    %p67 = scmp.eq.s32.totalorder %s15, 0
    %p68 = por %p66, %p67
    %s69 = ssub.s32 %s9, %s16
    %p70 = scmp.eq.s32.totalorder %s69, 0
    %s72 = sadd.s32 %s71, 1
    %s73 = scalar_select %p70, %s71, %s72
    %p76 = pneg %p70
    %p77 = scmp.eq.s32.totalorder %s9, 1
    %p78 = por %p76, %p77
    %p79 = scmp.ne.s32.totalorder %s71, %s74
    %p80 = scmp.eq.s32.totalorder %s9, 0
    %p81 = por %p79, %p80
    %p82 = scmp.ne.s32.totalorder %s71, %s74
    %p83 = scmp.eq.s32.totalorder %s14, 1
    %p84 = por %p82, %p83
    %p85 = scmp.ne.s32.totalorder %s74, %s75
    %p86 = scmp.eq.s32.totalorder %s14, 0
    %p87 = por %p85, %p86
    %p88 = scmp.ne.s32.totalorder %s74, %s75
    %p89 = scmp.eq.s32.totalorder %s15, 1
    %p90 = por %p88, %p89
    %p92 = scmp.ne.s32.totalorder %s75, %s91
    %p93 = scmp.eq.s32.totalorder %s15, 0
    %p94 = por %p92, %p93
    %s95 = ssub.s32 %s9, %s16
    %p96 = scmp.eq.s32.totalorder %s95, 0
    %s98 = sadd.s32 %s97, 1
    %s99 = scalar_select %p96, %s97, %s98
    %p102 = pneg %p96
    %p103 = scmp.eq.s32.totalorder %s9, 1
    %p104 = por %p102, %p103
    %p105 = scmp.ne.s32.totalorder %s97, %s100
    %p106 = scmp.eq.s32.totalorder %s9, 0
    %p107 = por %p105, %p106
    %p108 = scmp.ne.s32.totalorder %s97, %s100
    %p109 = scmp.eq.s32.totalorder %s14, 1
    %p110 = por %p108, %p109
    %p111 = scmp.ne.s32.totalorder %s100, %s101
    %p112 = scmp.eq.s32.totalorder %s14, 0
    %p113 = por %p111, %p112
    %p114 = scmp.ne.s32.totalorder %s100, %s101
    %p115 = scmp.eq.s32.totalorder %s15, 1
    %p116 = por %p114, %p115
    %p118 = scmp.ne.s32.totalorder %s101, %s117
    %p119 = scmp.eq.s32.totalorder %s15, 0
    %p120 = por %p118, %p119
    %p121 = scmp.le.s32.totalorder 1, %s9
    %p122 = scmp.lt.s32.totalorder %s9, 3
    %p123 = pnand %p121, %p122
    %p124 = pneg %p123
    // Predicated region
    $region9: #{vit_forward.19} parent=5 // pred_check
      _
    $region10: #{vit_forward.19} parent=5 // pred_check_branch
      %126 = sbr.rel (%p123) target = $region12
    $region11: #{vit_forward.19} parent=5 // pred_region
      %s127 = ssub.s32 %s9, 1
    $region12: #{vit_forward.19} parent=5 // pred_fallthru
      _
    %p128 = scmp.lt.s32.totalorder %s9, 2
    // Predicated region
    $region13: #{vit_forward.19} parent=5 // pred_check
      %p129 = pneg %p128
    $region14: #{vit_forward.19} parent=5 // pred_check_branch
      %131 = sbr.rel (%p129) target = $region16
    $region15: #{vit_forward.19} parent=5 // pred_region
      // Predicated region
      $region17: #{vit_forward.19} parent=15 // pred_check
        %p132 = pneg %p29
      $region18: #{vit_forward.19} parent=15 // pred_check_branch
        %134 = sbr.rel (%p132) target = $region20
      $region19: #{vit_forward.19} parent=15 // pred_region
        %p135 = scmp.lt.s32.totalorder %s9, 1
        %s136 = scalar_select %p135, %s9, 1
        %s137 = smul.addr %s136, 12
        %s138 = smul.addr %s137, 4
        %s139 = scalar_lea.vmem %s0, %s138
      $region20: #{vit_forward.19} parent=15 // pred_fallthru
        _
      // Predicated region
      $region21: #{vit_forward.19} parent=15 // pred_check
        %p140 = pneg %p55
      $region22: #{vit_forward.19} parent=15 // pred_check_branch
        %142 = sbr.rel (%p140) target = $region24
      $region23: #{vit_forward.19} parent=15 // pred_region
        %p143 = scmp.lt.s32.totalorder %s9, 1
        %s144 = scalar_select %p143, %s9, 1
        %s145 = smul.addr %s144, 12
        %s146 = smul.addr %s145, 4
        %s147 = scalar_lea.vmem %s1, %s146
      $region24: #{vit_forward.19} parent=15 // pred_fallthru
        _
      // Predicated region
      $region25: #{vit_forward.19} parent=15 // pred_check
        %p148 = pneg %p81
      $region26: #{vit_forward.19} parent=15 // pred_check_branch
        %150 = sbr.rel (%p148) target = $region28
      $region27: #{vit_forward.19} parent=15 // pred_region
        %p151 = scmp.lt.s32.totalorder %s9, 1
        %s152 = scalar_select %p151, %s9, 1
        %s153 = smul.addr %s152, 12
        %s154 = smul.addr %s153, 4
        %s155 = scalar_lea.vmem %s2, %s154
      $region28: #{vit_forward.19} parent=15 // pred_fallthru
        _
    $region16: #{vit_forward.19} parent=5 // pred_fallthru
      _
    %p156 = scmp.le.s32.totalorder 1, %s9
    %p157 = scmp.lt.s32.totalorder %s9, 3
    %p158 = pnand %p156, %p157
    %p159 = pneg %p158
    // Predicated region
    $region29: #{vit_forward.19} parent=5 // pred_check
      _
    $region30: #{vit_forward.19} parent=5 // pred_check_branch
      %161 = sbr.rel (%p158) target = $region32
    $region31: #{vit_forward.19} parent=5 // pred_region
      %s162 = ssub.s32 %s9, 1
      %p163 = scmp.lt.s32.totalorder %s14, 1
      %s164 = scalar_select %p163, %s14, 1
      %s165 = smul.addr %s164, 12
      %s166 = smul.addr %s165, 4
      %s167 = scalar_lea.vmem %s0, %s166
      %p168 = pneg %p35
      %p169 = pneg %p32
      %p170 = scmp.lt.s32.totalorder %s14, 1
      %s171 = scalar_select %p170, %s14, 1
      %s172 = smul.addr %s171, 12
      %s173 = smul.addr %s172, 4
      %s174 = scalar_lea.vmem %s1, %s173
      %p175 = pneg %p61
      %p176 = pneg %p58
      %p177 = scmp.lt.s32.totalorder %s14, 1
      %s178 = scalar_select %p177, %s14, 1
      %s179 = smul.addr %s178, 12
      %s180 = smul.addr %s179, 4
      %s181 = scalar_lea.vmem %s2, %s180
      %p182 = pneg %p87
      %p183 = pneg %p84
      %p184 = pneg %p113
      %p185 = pneg %p110
      %p186 = scmp.lt.s32.totalorder %s14, 1
      %s187 = scalar_select %p186, %s14, 1
      %s188 = smul.addr %s187, 12
      %s189 = smul.addr %s188, 8
      %s190 = scalar_lea.vmem %s3, %s189
      %p191 = scmp.lt.s32.totalorder %s14, 1
      %s192 = scalar_select %p191, %s14, 1
      %s193 = smul.addr %s192, 12
      %s194 = smul.addr %s193, 4
      %s195 = scalar_lea.vmem %s0, %s194
      %p196 = scmp.lt.s32.totalorder %s14, 1
      %s197 = scalar_select %p196, %s14, 1
      %s198 = smul.addr %s197, 12
      %s199 = smul.addr %s198, 4
      %s200 = scalar_lea.vmem %s1, %s199
      %p201 = scmp.lt.s32.totalorder %s14, 1
      %s202 = scalar_select %p201, %s14, 1
      %s203 = smul.addr %s202, 12
      %s204 = smul.addr %s203, 4
      %s205 = scalar_lea.vmem %s2, %s204
      %p206 = scmp.lt.s32.totalorder %s14, 1
      %s207 = scalar_select %p206, %s14, 1
      %s208 = smul.addr %s207, 12
      %s209 = smul.addr %s208, 8
      %s210 = scalar_lea.vmem %s3, %s209
      %v212 = vld [vmem:[%s195] sm:$0xf]
      %v213 = vld [vmem:[%s195 + $0x4] sm:$0xf]
      %v214 = vld [vmem:[%s195 + $0x8] sm:$0x1]
      %v215 = vld [vmem:[%s195 + $0xc] sm:$0xf]
      %v216 = vld [vmem:[%s195 + $0x10] sm:$0xf]
      %v217 = vld [vmem:[%s195 + $0x14] sm:$0x1]
      %v218 = vld [vmem:[%s195 + $0x18] sm:$0xf]
      %v219 = vld [vmem:[%s195 + $0x1c] sm:$0xf]
      %v220 = vld [vmem:[%s195 + $0x20] sm:$0x1]
      %v221 = vld [vmem:[%s195 + $0x24] sm:$0xf]
      %v222 = vld [vmem:[%s195 + $0x28] sm:$0xf]
      %v223 = vld [vmem:[%s195 + $0x2c] sm:$0x1]
      %v224 = vld [vmem:[%s200] sm:$0xf]
      %v225 = vld [vmem:[%s200 + $0x4] sm:$0xf]
      %v226 = vld [vmem:[%s200 + $0x8] sm:$0x1]
      %v227 = vld [vmem:[%s200 + $0xc] sm:$0xf]
      %v228 = vld [vmem:[%s200 + $0x10] sm:$0xf]
      %v229 = vld [vmem:[%s200 + $0x14] sm:$0x1]
      %v230 = vld [vmem:[%s200 + $0x18] sm:$0xf]
      %v231 = vld [vmem:[%s200 + $0x1c] sm:$0xf]
      %v232 = vld [vmem:[%s200 + $0x20] sm:$0x1]
      %v233 = vld [vmem:[%s200 + $0x24] sm:$0xf]
      %v234 = vld [vmem:[%s200 + $0x28] sm:$0xf]
      %v235 = vld [vmem:[%s200 + $0x2c] sm:$0x1]
      %v236 = vld [vmem:[%s205] sm:$0xf]
      %v237 = vld [vmem:[%s205 + $0x4] sm:$0xf]
      %v238 = vld [vmem:[%s205 + $0x8] sm:$0x1]
      %v239 = vld [vmem:[%s205 + $0xc] sm:$0xf]
      %v240 = vld [vmem:[%s205 + $0x10] sm:$0xf]
      %v241 = vld [vmem:[%s205 + $0x14] sm:$0x1]
      %v242 = vld [vmem:[%s205 + $0x18] sm:$0xf]
      %v243 = vld [vmem:[%s205 + $0x1c] sm:$0xf]
      %v244 = vld [vmem:[%s205 + $0x20] sm:$0x1]
      %v245 = vld [vmem:[%s205 + $0x24] sm:$0xf]
      %v246 = vld [vmem:[%s205 + $0x28] sm:$0xf]
      %v247 = vld [vmem:[%s205 + $0x2c] sm:$0x1]
      %v251 = vunpack.c.l.b16 %v212
      %v252 = vunpack.c.l.b16 %v213
      %v253 = vunpack.c.l.b16 %v214
      %v254 = vpack.c.b16 %v252, %v251
      %v255 = vpack.c.b16 %v253, %v253
      %v259 = vunpack.c.l.b16 %v224
      %v260 = vunpack.c.l.b16 %v225
      %v261 = vunpack.c.l.b16 %v226
      %v262 = vpack.c.b16 %v260, %v259
      %v263 = vpack.c.b16 %v261, %v261
      %vm264 = vcmask 64512
      %v266 = vsel %vm264, %v254, 0
      %v269 = vsel %vm264, %v255, 0
      %v272 = vsel %vm264, %v262, 0
      %v275 = vsel %vm264, %v263, 0
      %277 = vmatpush.bf16.xpose.msra.mxu0 0
      %278 = vmatpush.bf16.xpose.msra.mxu0 0
      %279 = vmatpush.bf16.xpose.msra.mxu0 0
      %280 = vmatpush.bf16.xpose.msra.mxu0 0
      %281 = vmatpush.bf16.xpose.msra.mxu0 0
      %282 = vmatpush.bf16.xpose.msra.mxu0 0
      %283 = vmatpush.bf16.xpose.msra.mxu0 %v275
      %284 = vmatpush.bf16.xpose.msra.mxu0 %v272
      %285 = vmatmul.bf16.gmra.mxu0 %v266
      %v286 = vpop.f32.mrf.mxu0
      %v287 = vadd.f32 0.0, %v286
      %v288 = vpop.f32.mrf.mxu0
      %v289 = vadd.f32 0.0, %v288
      %290 = vmatmul.bf16.gmra.mxu0 %v269
      %v291 = vpop.f32.mrf.mxu0
      %v292 = vadd.f32 0.0, %v291
      %v293 = vpop.f32.mrf.mxu0
      %294 = vdwg.mxu0
      %v298 = vunpack.c.l.b16 %v215
      %v299 = vunpack.c.l.b16 %v216
      %v300 = vunpack.c.l.b16 %v217
      %v301 = vpack.c.b16 %v299, %v298
      %v302 = vpack.c.b16 %v300, %v300
      %v306 = vunpack.c.l.b16 %v227
      %v307 = vunpack.c.l.b16 %v228
      %v308 = vunpack.c.l.b16 %v229
      %v309 = vpack.c.b16 %v307, %v306
      %v310 = vpack.c.b16 %v308, %v308
      %v312 = vsel %vm264, %v301, 0
      %v315 = vsel %vm264, %v302, 0
      %v318 = vsel %vm264, %v309, 0
      %v321 = vsel %vm264, %v310, 0
      %323 = vmatpush.bf16.xpose.msra.mxu0 0
      %324 = vmatpush.bf16.xpose.msra.mxu0 0
      %325 = vmatpush.bf16.xpose.msra.mxu0 0
      %326 = vmatpush.bf16.xpose.msra.mxu0 0
      %327 = vmatpush.bf16.xpose.msra.mxu0 0
      %328 = vmatpush.bf16.xpose.msra.mxu0 0
      %329 = vmatpush.bf16.xpose.msra.mxu0 %v321
      %330 = vmatpush.bf16.xpose.msra.mxu0 %v318
      %331 = vmatmul.bf16.gmra.mxu0 %v312
      %v332 = vpop.f32.mrf.mxu0
      %v333 = vadd.f32 0.0, %v332
      %v334 = vpop.f32.mrf.mxu0
      %v335 = vadd.f32 0.0, %v334
      %336 = vmatmul.bf16.gmra.mxu0 %v315
      %v337 = vpop.f32.mrf.mxu0
      %v338 = vadd.f32 0.0, %v337
      %v339 = vpop.f32.mrf.mxu0
      %340 = vdwg.mxu0
      %v344 = vunpack.c.l.b16 %v218
      %v345 = vunpack.c.l.b16 %v219
      %v346 = vunpack.c.l.b16 %v220
      %v347 = vpack.c.b16 %v345, %v344
      %v348 = vpack.c.b16 %v346, %v346
      %v352 = vunpack.c.l.b16 %v230
      %v353 = vunpack.c.l.b16 %v231
      %v354 = vunpack.c.l.b16 %v232
      %v355 = vpack.c.b16 %v353, %v352
      %v356 = vpack.c.b16 %v354, %v354
      %v358 = vsel %vm264, %v347, 0
      %v361 = vsel %vm264, %v348, 0
      %v364 = vsel %vm264, %v355, 0
      %v367 = vsel %vm264, %v356, 0
      %369 = vmatpush.bf16.xpose.msra.mxu0 0
      %370 = vmatpush.bf16.xpose.msra.mxu0 0
      %371 = vmatpush.bf16.xpose.msra.mxu0 0
      %372 = vmatpush.bf16.xpose.msra.mxu0 0
      %373 = vmatpush.bf16.xpose.msra.mxu0 0
      %374 = vmatpush.bf16.xpose.msra.mxu0 0
      %375 = vmatpush.bf16.xpose.msra.mxu0 %v367
      %376 = vmatpush.bf16.xpose.msra.mxu0 %v364
      %377 = vmatmul.bf16.gmra.mxu0 %v358
      %v378 = vpop.f32.mrf.mxu0
      %v379 = vadd.f32 0.0, %v378
      %v380 = vpop.f32.mrf.mxu0
      %v381 = vadd.f32 0.0, %v380
      %382 = vmatmul.bf16.gmra.mxu0 %v361
      %v383 = vpop.f32.mrf.mxu0
      %v384 = vadd.f32 0.0, %v383
      %v385 = vpop.f32.mrf.mxu0
      %386 = vdwg.mxu0
      %v390 = vunpack.c.l.b16 %v221
      %v391 = vunpack.c.l.b16 %v222
      %v392 = vunpack.c.l.b16 %v223
      %v393 = vpack.c.b16 %v391, %v390
      %v394 = vpack.c.b16 %v392, %v392
      %v398 = vunpack.c.l.b16 %v233
      %v399 = vunpack.c.l.b16 %v234
      %v400 = vunpack.c.l.b16 %v235
      %v401 = vpack.c.b16 %v399, %v398
      %v402 = vpack.c.b16 %v400, %v400
      %v404 = vsel %vm264, %v393, 0
      %v407 = vsel %vm264, %v394, 0
      %v410 = vsel %vm264, %v401, 0
      %v413 = vsel %vm264, %v402, 0
      %415 = vmatpush.bf16.xpose.msra.mxu0 0
      %416 = vmatpush.bf16.xpose.msra.mxu0 0
      %417 = vmatpush.bf16.xpose.msra.mxu0 0
      %418 = vmatpush.bf16.xpose.msra.mxu0 0
      %419 = vmatpush.bf16.xpose.msra.mxu0 0
      %420 = vmatpush.bf16.xpose.msra.mxu0 0
      %421 = vmatpush.bf16.xpose.msra.mxu0 %v413
      %422 = vmatpush.bf16.xpose.msra.mxu0 %v410
      %423 = vmatmul.bf16.gmra.mxu0 %v404
      %v424 = vpop.f32.mrf.mxu0
      %v425 = vadd.f32 0.0, %v424
      %v426 = vpop.f32.mrf.mxu0
      %v427 = vadd.f32 0.0, %v426
      %428 = vmatmul.bf16.gmra.mxu0 %v407
      %v429 = vpop.f32.mrf.mxu0
      %v430 = vadd.f32 0.0, %v429
      %v431 = vpop.f32.mrf.mxu0
      %432 = vdwg.mxu0
      %v433 = vmul.f32 %v287, 0.35355338
      %v434 = vmul.f32 %v289, 0.35355338
      %v435 = vmul.f32 %v292, 0.35355338
      %v436 = vmul.f32 %v333, 0.35355338
      %v437 = vmul.f32 %v335, 0.35355338
      %v438 = vmul.f32 %v338, 0.35355338
      %v439 = vmul.f32 %v379, 0.35355338
      %v440 = vmul.f32 %v381, 0.35355338
      %v441 = vmul.f32 %v384, 0.35355338
      %v442 = vmul.f32 %v425, 0.35355338
      %v443 = vmul.f32 %v427, 0.35355338
      %v444 = vmul.f32 %v430, 0.35355338
      %vm445 = vcmask 138240
      %v446 = vsel %vm445, %v433, -inf
      %447 = vmax.xlane.f32.xlu0 %v446
      %v448 = vpop.xlane.xlu0 %447
      %v449 = vsel %vm445, %v434, -inf
      %450 = vmax.xlane.f32.xlu0 %v449
      %v451 = vpop.xlane.xlu0 %450
      %vm452 = vcmask 131072
      %v453 = vsel %vm452, %v435, -inf
      %454 = vmax.xlane.f32.xlu0 %v453
      %v455 = vpop.xlane.xlu0 %454
      %v456 = vsel %vm445, %v436, -inf
      %457 = vmax.xlane.f32.xlu0 %v456
      %v458 = vpop.xlane.xlu0 %457
      %v459 = vsel %vm445, %v437, -inf
      %460 = vmax.xlane.f32.xlu0 %v459
      %v461 = vpop.xlane.xlu0 %460
      %v462 = vsel %vm452, %v438, -inf
      %463 = vmax.xlane.f32.xlu0 %v462
      %v464 = vpop.xlane.xlu0 %463
      %v465 = vsel %vm445, %v439, -inf
      %466 = vmax.xlane.f32.xlu0 %v465
      %v467 = vpop.xlane.xlu0 %466
      %v468 = vsel %vm445, %v440, -inf
      %469 = vmax.xlane.f32.xlu0 %v468
      %v470 = vpop.xlane.xlu0 %469
      %v471 = vsel %vm452, %v441, -inf
      %472 = vmax.xlane.f32.xlu0 %v471
      %v473 = vpop.xlane.xlu0 %472
      %v474 = vsel %vm445, %v442, -inf
      %475 = vmax.xlane.f32.xlu0 %v474
      %v476 = vpop.xlane.xlu0 %475
      %v477 = vsel %vm445, %v443, -inf
      %478 = vmax.xlane.f32.xlu0 %v477
      %v479 = vpop.xlane.xlu0 %478
      %v480 = vsel %vm452, %v444, -inf
      %481 = vmax.xlane.f32.xlu0 %v480
      %v482 = vpop.xlane.xlu0 %481
      %v483 = vsub.f32 %v433, %v448
      %v484 = vsub.f32 %v434, %v451
      %v485 = vsub.f32 %v435, %v455
      %v486 = vsub.f32 %v436, %v458
      %v487 = vsub.f32 %v437, %v461
      %v488 = vsub.f32 %v438, %v464
      %v489 = vsub.f32 %v439, %v467
      %v490 = vsub.f32 %v440, %v470
      %v491 = vsub.f32 %v441, %v473
      %v492 = vsub.f32 %v442, %v476
      %v493 = vsub.f32 %v443, %v479
      %v494 = vsub.f32 %v444, %v482
      %v495 = vmul.f32 %v483, 1.442695
      %v496 = vpow.pop %v495
      %v497 = vmul.f32 %v484, 1.442695
      %v498 = vpow.pop %v497
      %v499 = vmul.f32 %v485, 1.442695
      %v500 = vpow.pop %v499
      %v501 = vmul.f32 %v486, 1.442695
      %v502 = vpow.pop %v501
      %v503 = vmul.f32 %v487, 1.442695
      %v504 = vpow.pop %v503
      %v505 = vmul.f32 %v488, 1.442695
      %v506 = vpow.pop %v505
      %v507 = vmul.f32 %v489, 1.442695
      %v508 = vpow.pop %v507
      %v509 = vmul.f32 %v490, 1.442695
      %v510 = vpow.pop %v509
      %v511 = vmul.f32 %v491, 1.442695
      %v512 = vpow.pop %v511
      %v513 = vmul.f32 %v492, 1.442695
      %v514 = vpow.pop %v513
      %v515 = vmul.f32 %v493, 1.442695
      %v516 = vpow.pop %v515
      %v517 = vmul.f32 %v494, 1.442695
      %v518 = vpow.pop %v517
      %v519 = vsel %vm445, %v496, 0.0
      %520 = vadd.xlane.f32.xlu0 %v519
      %v521 = vpop.xlane.xlu0 %520
      %v522 = vsel %vm445, %v498, 0.0
      %523 = vadd.xlane.f32.xlu0 %v522
      %v524 = vpop.xlane.xlu0 %523
      %v525 = vsel %vm452, %v500, 0.0
      %526 = vadd.xlane.f32.xlu0 %v525
      %v527 = vpop.xlane.xlu0 %526
      %v528 = vsel %vm445, %v502, 0.0
      %529 = vadd.xlane.f32.xlu0 %v528
      %v530 = vpop.xlane.xlu0 %529
      %v531 = vsel %vm445, %v504, 0.0
      %532 = vadd.xlane.f32.xlu0 %v531
      %v533 = vpop.xlane.xlu0 %532
      %v534 = vsel %vm452, %v506, 0.0
      %535 = vadd.xlane.f32.xlu0 %v534
      %v536 = vpop.xlane.xlu0 %535
      %v537 = vsel %vm445, %v508, 0.0
      %538 = vadd.xlane.f32.xlu0 %v537
      %v539 = vpop.xlane.xlu0 %538
      %v540 = vsel %vm445, %v510, 0.0
      %541 = vadd.xlane.f32.xlu0 %v540
      %v542 = vpop.xlane.xlu0 %541
      %v543 = vsel %vm452, %v512, 0.0
      %544 = vadd.xlane.f32.xlu0 %v543
      %v545 = vpop.xlane.xlu0 %544
      %v546 = vsel %vm445, %v514, 0.0
      %547 = vadd.xlane.f32.xlu0 %v546
      %v548 = vpop.xlane.xlu0 %547
      %v549 = vsel %vm445, %v516, 0.0
      %550 = vadd.xlane.f32.xlu0 %v549
      %v551 = vpop.xlane.xlu0 %550
      %v552 = vsel %vm452, %v518, 0.0
      %553 = vadd.xlane.f32.xlu0 %v552
      %v554 = vpop.xlane.xlu0 %553
      %v555 = vrcp.pop %v521
      %v556 = vrcp.pop %v524
      %v557 = vrcp.pop %v527
      %v558 = vrcp.pop %v530
      %v559 = vrcp.pop %v533
      %v560 = vrcp.pop %v536
      %v561 = vrcp.pop %v539
      %v562 = vrcp.pop %v542
      %v563 = vrcp.pop %v545
      %v564 = vrcp.pop %v548
      %v565 = vrcp.pop %v551
      %v566 = vrcp.pop %v554
      %v567 = vmul.f32 %v496, %v555
      %v568 = vmul.f32 %v498, %v556
      %v569 = vmul.f32 %v500, %v557
      %v570 = vmul.f32 %v502, %v558
      %v571 = vmul.f32 %v504, %v559
      %v572 = vmul.f32 %v506, %v560
      %v573 = vmul.f32 %v508, %v561
      %v574 = vmul.f32 %v510, %v562
      %v575 = vmul.f32 %v512, %v563
      %v576 = vmul.f32 %v514, %v564
      %v577 = vmul.f32 %v516, %v565
      %v578 = vmul.f32 %v518, %v566
      %v579 = vpack.c.bf16 %v567, %v567
      %v580 = vpack.c.bf16 %v568, %v568
      %v581 = vpack.c.bf16 %v569, %v569
      %v582 = vpack.c.bf16 %v570, %v570
      %v583 = vpack.c.bf16 %v571, %v571
      %v584 = vpack.c.bf16 %v572, %v572
      %v585 = vpack.c.bf16 %v573, %v573
      %v586 = vpack.c.bf16 %v574, %v574
      %v587 = vpack.c.bf16 %v575, %v575
      %v588 = vpack.c.bf16 %v576, %v576
      %v589 = vpack.c.bf16 %v577, %v577
      %v590 = vpack.c.bf16 %v578, %v578
      %v594 = vunpack.c.l.b16 %v579
      %v595 = vunpack.c.l.b16 %v580
      %v596 = vunpack.c.l.b16 %v581
      %v597 = vpack.c.b16 %v595, %v594
      %v598 = vpack.c.b16 %v596, %v596
      %v602 = vunpack.c.l.b16 %v236
      %v603 = vunpack.c.l.b16 %v237
      %v604 = vunpack.c.l.b16 %v238
      %v605 = vpack.c.b16 %v603, %v602
      %v606 = vpack.c.b16 %v604, %v604
      %v609 = vsel %vm445, %v597, 0
      %v612 = vsel %vm445, %v598, 0
      %vm614 = vcmask 1040384
      %v615 = vsel 0, 4294967295, 65535
      %v616 = vsel %vm614, %v615, 0
      %v618 = vand.u32 %v606, %v616
      %620 = vmatpush.bf16.msra.mxu0 0
      %621 = vmatpush.bf16.msra.mxu0 0
      %622 = vmatpush.bf16.msra.mxu0 0
      %623 = vmatpush.bf16.msra.mxu0 0
      %624 = vmatpush.bf16.msra.mxu0 0
      %625 = vmatpush.bf16.msra.mxu0 0
      %626 = vmatpush.bf16.msra.mxu0 %v618
      %627 = vmatpush.bf16.msra.mxu0 %v605
      %628 = vmatmul.bf16.gmra.mxu0 %v609
      %v629 = vpop.f32.mrf.mxu0
      %v630 = vadd.f32 0.0, %v629
      %v631 = vpop.f32.mrf.mxu0
      %v632 = vadd.f32 0.0, %v631
      %633 = vmatmul.bf16.gmra.mxu0 %v612
      %v634 = vpop.f32.mrf.mxu0
      %v635 = vadd.f32 0.0, %v634
      %v636 = vpop.f32.mrf.mxu0
      %637 = vdwg.mxu0
      %v641 = vunpack.c.l.b16 %v582
      %v642 = vunpack.c.l.b16 %v583
      %v643 = vunpack.c.l.b16 %v584
      %v644 = vpack.c.b16 %v642, %v641
      %v645 = vpack.c.b16 %v643, %v643
      %v649 = vunpack.c.l.b16 %v239
      %v650 = vunpack.c.l.b16 %v240
      %v651 = vunpack.c.l.b16 %v241
      %v652 = vpack.c.b16 %v650, %v649
      %v653 = vpack.c.b16 %v651, %v651
      %v656 = vsel %vm445, %v644, 0
      %v659 = vsel %vm445, %v645, 0
      %v662 = vand.u32 %v653, %v616
      %664 = vmatpush.bf16.msra.mxu0 0
      %665 = vmatpush.bf16.msra.mxu0 0
      %666 = vmatpush.bf16.msra.mxu0 0
      %667 = vmatpush.bf16.msra.mxu0 0
      %668 = vmatpush.bf16.msra.mxu0 0
      %669 = vmatpush.bf16.msra.mxu0 0
      %670 = vmatpush.bf16.msra.mxu0 %v662
      %671 = vmatpush.bf16.msra.mxu0 %v652
      %672 = vmatmul.bf16.gmra.mxu0 %v656
      %v673 = vpop.f32.mrf.mxu0
      %v674 = vadd.f32 0.0, %v673
      %v675 = vpop.f32.mrf.mxu0
      %v676 = vadd.f32 0.0, %v675
      %677 = vmatmul.bf16.gmra.mxu0 %v659
      %v678 = vpop.f32.mrf.mxu0
      %v679 = vadd.f32 0.0, %v678
      %v680 = vpop.f32.mrf.mxu0
      %681 = vdwg.mxu0
      %v685 = vunpack.c.l.b16 %v585
      %v686 = vunpack.c.l.b16 %v586
      %v687 = vunpack.c.l.b16 %v587
      %v688 = vpack.c.b16 %v686, %v685
      %v689 = vpack.c.b16 %v687, %v687
      %v693 = vunpack.c.l.b16 %v242
      %v694 = vunpack.c.l.b16 %v243
      %v695 = vunpack.c.l.b16 %v244
      %v696 = vpack.c.b16 %v694, %v693
      %v697 = vpack.c.b16 %v695, %v695
      %v700 = vsel %vm445, %v688, 0
      %v703 = vsel %vm445, %v689, 0
      %v706 = vand.u32 %v697, %v616
      %708 = vmatpush.bf16.msra.mxu0 0
      %709 = vmatpush.bf16.msra.mxu0 0
      %710 = vmatpush.bf16.msra.mxu0 0
      %711 = vmatpush.bf16.msra.mxu0 0
      %712 = vmatpush.bf16.msra.mxu0 0
      %713 = vmatpush.bf16.msra.mxu0 0
      %714 = vmatpush.bf16.msra.mxu0 %v706
      %715 = vmatpush.bf16.msra.mxu0 %v696
      %716 = vmatmul.bf16.gmra.mxu0 %v700
      %v717 = vpop.f32.mrf.mxu0
      %v718 = vadd.f32 0.0, %v717
      %v719 = vpop.f32.mrf.mxu0
      %v720 = vadd.f32 0.0, %v719
      %721 = vmatmul.bf16.gmra.mxu0 %v703
      %v722 = vpop.f32.mrf.mxu0
      %v723 = vadd.f32 0.0, %v722
      %v724 = vpop.f32.mrf.mxu0
      %725 = vdwg.mxu0
      %v729 = vunpack.c.l.b16 %v588
      %v730 = vunpack.c.l.b16 %v589
      %v731 = vunpack.c.l.b16 %v590
      %v732 = vpack.c.b16 %v730, %v729
      %v733 = vpack.c.b16 %v731, %v731
      %v737 = vunpack.c.l.b16 %v245
      %v738 = vunpack.c.l.b16 %v246
      %v739 = vunpack.c.l.b16 %v247
      %v740 = vpack.c.b16 %v738, %v737
      %v741 = vpack.c.b16 %v739, %v739
      %v744 = vsel %vm445, %v732, 0
      %v747 = vsel %vm445, %v733, 0
      %v750 = vand.u32 %v741, %v616
      %752 = vmatpush.bf16.msra.mxu0 0
      %753 = vmatpush.bf16.msra.mxu0 0
      %754 = vmatpush.bf16.msra.mxu0 0
      %755 = vmatpush.bf16.msra.mxu0 0
      %756 = vmatpush.bf16.msra.mxu0 0
      %757 = vmatpush.bf16.msra.mxu0 0
      %758 = vmatpush.bf16.msra.mxu0 %v750
      %759 = vmatpush.bf16.msra.mxu0 %v740
      %760 = vmatmul.bf16.gmra.mxu0 %v744
      %v761 = vpop.f32.mrf.mxu0
      %v762 = vadd.f32 0.0, %v761
      %v763 = vpop.f32.mrf.mxu0
      %v764 = vadd.f32 0.0, %v763
      %765 = vmatmul.bf16.gmra.mxu0 %v747
      %v766 = vpop.f32.mrf.mxu0
      %v767 = vadd.f32 0.0, %v766
      %v768 = vpop.f32.mrf.mxu0
      %769 = vdwg.mxu0
      %770 = vst.msk [vmem:[%s210] sm:$0xff] %vm264, %v630
      %771 = vst.msk [vmem:[%s210 + $0x8] sm:$0xff] %vm264, %v632
      %vm772 = vcmask 57344
      %773 = vst.msk [vmem:[%s210 + $0x10] sm:$0x1] %vm772, %v635
      %774 = vst.msk [vmem:[%s210 + $0x18] sm:$0xff] %vm264, %v674
      %775 = vst.msk [vmem:[%s210 + $0x20] sm:$0xff] %vm264, %v676
      %776 = vst.msk [vmem:[%s210 + $0x28] sm:$0x1] %vm772, %v679
      %777 = vst.msk [vmem:[%s210 + $0x30] sm:$0xff] %vm264, %v718
      %778 = vst.msk [vmem:[%s210 + $0x38] sm:$0xff] %vm264, %v720
      %779 = vst.msk [vmem:[%s210 + $0x40] sm:$0x1] %vm772, %v723
      %780 = vst.msk [vmem:[%s210 + $0x48] sm:$0xff] %vm264, %v762
      %781 = vst.msk [vmem:[%s210 + $0x50] sm:$0xff] %vm264, %v764
      %782 = vst.msk [vmem:[%s210 + $0x58] sm:$0x1] %vm772, %v767
      %p783 = scmp.lt.s32.totalorder %s14, 1
      %s784 = scalar_select %p783, %s14, 1
      %s785 = smul.addr %s784, 12
      %s786 = smul.addr %s785, 8
      %s787 = scalar_lea.vmem %s3, %s786
      // Predicated region
      $region33: #{vit_forward.19} parent=31 // pred_check
        %p788 = pneg %p110
      $region34: #{vit_forward.19} parent=31 // pred_check_branch
        %790 = sbr.rel (%p788) target = $region36
      $region35: #{vit_forward.19} parent=31 // pred_region
        _
      $region36: #{vit_forward.19} parent=31 // pred_fallthru
        _
    $region32: #{vit_forward.19} parent=5 // pred_fallthru
      _
    %p791 = scmp.le.s32.totalorder 2, %s9
    // Predicated region
    $region37: #{vit_forward.19} parent=5 // pred_check
      %p792 = pneg %p791
    $region38: #{vit_forward.19} parent=5 // pred_check_branch
      %794 = sbr.rel (%p792) target = $region40
    $region39: #{vit_forward.19} parent=5 // pred_region
      %s795 = ssub.s32 %s9, 2
      // Predicated region
      $region41: #{vit_forward.19} parent=39 // pred_check
        %p796 = pneg %p116
      $region42: #{vit_forward.19} parent=39 // pred_check_branch
        %798 = sbr.rel (%p796) target = $region44
      $region43: #{vit_forward.19} parent=39 // pred_region
        %p799 = scmp.lt.s32.totalorder %s15, 1
        %s800 = scalar_select %p799, %s15, 1
        %s801 = smul.addr %s800, 12
        %s802 = smul.addr %s801, 8
        %s803 = scalar_lea.vmem %s3, %s802
      $region44: #{vit_forward.19} parent=39 // pred_fallthru
        _
    $region40: #{vit_forward.19} parent=5 // pred_fallthru
      _
  $region6: #{vit_forward.19} parent=0 // loop_footer
    %s13 = sadd.s32 1, %s9
  $region7: #{vit_forward.19} parent=0 // loop_footer_branch
    %8 = sbr.rel target = $region3
  $region8: #{vit_forward.19} parent=0 // loop_exit
    _

// kernel: vit_forward.23
$region0: #{vit_forward.23}
  #allocation0 [shape = 'u32[]', space=smem, size = 0x4, offset = 0x4, fixed_abs, tag = 'smem constant byte address 0x4 - core index']
  #allocation1 [shape = 'u32[72,128]{1,0:T(1,128)}', space=vmem, size = 0x9000, scoped, tag = 'internal scratch']
  %s0 = inlined_call_operand.vmem [shape: bf16[34,128], index: 0, kind: input, shape index: {}]
  %s1 = inlined_call_operand.vmem [shape: bf16[128,128], index: 1, kind: input, shape index: {}]
  %s2 = inlined_call_operand.vmem [shape: f32[1,128], index: 2, kind: input, shape index: {}]
  %s3 = inlined_call_operand.vmem [shape: f32[34,128], index: 3, kind: output, shape index: {}]
  %s4 = sld [smem:[#allocation0]]
  $region22: #{vit_forward.23} parent=0
    _
  %s6 = ssub.s32 1, %s4
  %s7 = scalar_select 0, %s6, %s4
  // Predicated region
  $region2: #{vit_forward.23} parent=0 // pred_check
    _
  $region3: #{vit_forward.23} parent=0 // pred_check_branch
    %9 = sbr.rel (0) target = $region5
  $region4: #{vit_forward.23} parent=0 // pred_region
    _
  $region5: #{vit_forward.23} parent=0 // pred_fallthru
    _
  // Predicated region
  $region6: #{vit_forward.23} parent=0 // pred_check
    _
  $region7: #{vit_forward.23} parent=0 // pred_check_branch
    %11 = sbr.rel (0) target = $region9
  $region8: #{vit_forward.23} parent=0 // pred_region
    _
  $region9: #{vit_forward.23} parent=0 // pred_fallthru
    _
  // Predicated region
  $region10: #{vit_forward.23} parent=0 // pred_check
    _
  $region11: #{vit_forward.23} parent=0 // pred_check_branch
    %13 = sbr.rel (0) target = $region13
  $region12: #{vit_forward.23} parent=0 // pred_region
    _
  $region13: #{vit_forward.23} parent=0 // pred_fallthru
    _
  %v14 = vld [vmem:[%s0] sm:$0xf]
  %v15 = vld [vmem:[%s0 + $0x4] sm:$0xf]
  %v16 = vld [vmem:[%s0 + $0x8] sm:$0xf]
  %v17 = vld [vmem:[%s0 + $0xc] sm:$0xf]
  %v18 = vld [vmem:[%s0 + $0x10] sm:$0xf]
  %v19 = vld [vmem:[%s1] sm:$0xf]
  %v20 = vld [vmem:[%s1 + $0x4] sm:$0xf]
  %v21 = vld [vmem:[%s1 + $0x8] sm:$0xf]
  %v22 = vld [vmem:[%s1 + $0xc] sm:$0xf]
  %v23 = vld [vmem:[%s1 + $0x10] sm:$0xf]
  %v24 = vld [vmem:[%s1 + $0x14] sm:$0xf]
  %v25 = vld [vmem:[%s1 + $0x18] sm:$0xf]
  %v26 = vld [vmem:[%s1 + $0x1c] sm:$0xf]
  %v27 = vld [vmem:[%s1 + $0x20] sm:$0xf]
  %v28 = vld [vmem:[%s1 + $0x24] sm:$0xf]
  %v29 = vld [vmem:[%s1 + $0x28] sm:$0xf]
  %v30 = vld [vmem:[%s1 + $0x2c] sm:$0xf]
  %v31 = vld [vmem:[%s1 + $0x30] sm:$0xf]
  %v32 = vld [vmem:[%s1 + $0x34] sm:$0xf]
  %v33 = vld [vmem:[%s1 + $0x38] sm:$0xf]
  %v34 = vld [vmem:[%s1 + $0x3c] sm:$0xf]
  %v35 = vld [vmem:[%s2] sm:$0x1]
  %v37 = vperm.slane %v35, 0
  %v44 = vunpack.c.l.b16 %v14
  %v45 = vunpack.c.l.b16 %v15
  %v46 = vunpack.c.l.b16 %v16
  %v47 = vunpack.c.l.b16 %v17
  %v48 = vunpack.c.l.b16 %v18
  %v49 = vpack.c.b16 %v45, %v44
  %v50 = vpack.c.b16 %v47, %v46
  %v51 = vpack.c.b16 %v48, %v48
  %v71 = vunpack.c.l.b16 %v19
  %v72 = vunpack.c.l.b16 %v20
  %v73 = vunpack.c.l.b16 %v21
  %v74 = vunpack.c.l.b16 %v22
  %v75 = vunpack.c.l.b16 %v23
  %v76 = vunpack.c.l.b16 %v24
  %v77 = vunpack.c.l.b16 %v25
  %v78 = vunpack.c.l.b16 %v26
  %v79 = vunpack.c.l.b16 %v27
  %v80 = vunpack.c.l.b16 %v28
  %v81 = vunpack.c.l.b16 %v29
  %v82 = vunpack.c.l.b16 %v30
  %v83 = vunpack.c.l.b16 %v31
  %v84 = vunpack.c.l.b16 %v32
  %v85 = vunpack.c.l.b16 %v33
  %v86 = vunpack.c.l.b16 %v34
  %v87 = vpack.c.b16 %v72, %v71
  %v88 = vpack.c.b16 %v74, %v73
  %v89 = vpack.c.b16 %v76, %v75
  %v90 = vpack.c.b16 %v78, %v77
  %v91 = vpack.c.b16 %v80, %v79
  %v92 = vpack.c.b16 %v82, %v81
  %v93 = vpack.c.b16 %v84, %v83
  %v94 = vpack.c.b16 %v86, %v85
  %103 = vmatpush.bf16.msra.mxu0 %v94
  %104 = vmatpush.bf16.msra.mxu0 %v93
  %105 = vmatpush.bf16.msra.mxu0 %v92
  %106 = vmatpush.bf16.msra.mxu0 %v91
  %107 = vmatpush.bf16.msra.mxu0 %v90
  %108 = vmatpush.bf16.msra.mxu0 %v89
  %109 = vmatpush.bf16.msra.mxu0 %v88
  %110 = vmatpush.bf16.msra.mxu0 %v87
  %111 = vmatmul.bf16.gmra.mxu0 %v49
  %v112 = vpop.f32.mrf.mxu0
  %v113 = vadd.f32 %v37, %v112
  %v114 = vpop.f32.mrf.mxu0
  %v115 = vadd.f32 %v37, %v114
  %116 = vmatmul.bf16.gmra.mxu0 %v50
  %v117 = vpop.f32.mrf.mxu0
  %v118 = vadd.f32 %v37, %v117
  %v119 = vpop.f32.mrf.mxu0
  %v120 = vadd.f32 %v37, %v119
  %121 = vmatmul.bf16.gmra.mxu0 %v51
  %v122 = vpop.f32.mrf.mxu0
  %v123 = vadd.f32 %v37, %v122
  %v124 = vpop.f32.mrf.mxu0
  %125 = vdwg.mxu0
  %126 = vst [vmem:[%s3] sm:$0xff] %v113
  %127 = vst [vmem:[%s3 + $0x8] sm:$0xff] %v115
  %128 = vst [vmem:[%s3 + $0x10] sm:$0xff] %v118
  %129 = vst [vmem:[%s3 + $0x18] sm:$0xff] %v120
  %130 = vst [vmem:[%s3 + $0x20] sm:$0xff] %v123
  // Predicated region
  $region14: #{vit_forward.23} parent=0 // pred_check
    _
  $region15: #{vit_forward.23} parent=0 // pred_check_branch
    %132 = sbr.rel (0) target = $region17
  $region16: #{vit_forward.23} parent=0 // pred_region
    _
  $region17: #{vit_forward.23} parent=0 // pred_fallthru
    _
  // Predicated region
  $region18: #{vit_forward.23} parent=0 // pred_check
    _
  $region19: #{vit_forward.23} parent=0 // pred_check_branch
    %134 = sbr.rel (0) target = $region21
  $region20: #{vit_forward.23} parent=0 // pred_region
    _
  $region21: #{vit_forward.23} parent=0 // pred_fallthru
    _

</llo_original>
